<compile_context>
chip_gen: v7x
topology: tpu7x:2x2x1
jax: 0.10.0
libtpu: 0.0.40
codegen_flags: <defaults>
</compile_context>

<pallas_src>
import math

import jax
import jax.numpy as jnp
from jax.experimental import pallas as pl
from jax.experimental.pallas import tpu as pltpu

HIDDEN = 256
LANE = 128
MIN_TILE_B = 256     # >= MXU height on v6e/v7x, multiple of 8 sublanes
MAX_TILE_B = 2048    # keeps per-step VMEM well under every generation's limit


def _device_kind():
    try:
        return jax.devices()[0].device_kind.lower()
    except Exception:
        return ""


def _default_compute_dtype():
    # v5e has no bf16 VPU/EUP -> keep the elementwise epilogues in f32 there.
    return jnp.float32 if "v5" in _device_kind() else jnp.bfloat16


def _batch_dim_semantics(num_steps):
    # Only CORE_PARALLEL actually shards a grid axis across v7x's 2 TensorCores;
    # plain "parallel" is the safe choice on single-TC chips.
    if "v7" in _device_kind() and num_steps >= 2:
        return (pltpu.CORE_PARALLEL,)
    return ("parallel",)


def _pick_tile_b(batch):
    """Largest tile (amortizes per-step overhead) while keeping >= 2 grid steps
    when the batch allows it, so writeback of tile i-1 overlaps compute of i."""
    b_pad = pl.cdiv(batch, MIN_TILE_B) * MIN_TILE_B
    tile = min(MAX_TILE_B, max(MIN_TILE_B, b_pad // 2))
    tile = max(MIN_TILE_B, (tile // MIN_TILE_B) * MIN_TILE_B)
    return tile


def mlp_kernel(x_ref, w1_ref, b1_ref, w2_ref, b2_ref, w3t_ref, b3t_ref, o_ref):
    # Compute dtype of the VPU epilogues = dtype prepare_params stored the small
    # params in: f32 on v5e, bf16 on v6e/v7x.
    cd = w1_ref.dtype
    x = x_ref[...].astype(cd)          # (tile_b, in_dim)
    w1 = w1_ref[...]                   # (in_dim, hidden)

    # Layer 1: K = in_dim is tiny (2) -> VPU outer-product sum instead of an
    # MXU matmul that would waste the systolic array and pay push/drain latency.
    in_dim = x.shape[1]
    h1 = x[:, 0:1] * w1[0:1, :]
    for k in range(1, in_dim):
        h1 = h1 + x[:, k:k + 1] * w1[k:k + 1, :]
    h1 = jnp.maximum(h1 + b1_ref[...], 0.0)               # (tile_b, hidden), cd

    # Layer 2: 256x256 matmul on the MXU, bf16 inputs, f32 accumulation; the
    # bias-add / ReLU epilogue runs in the compute dtype on the VPU.
    h2 = jnp.dot(h1.astype(w2_ref.dtype), w2_ref[...],
                 preferred_element_type=jnp.float32)
    h2 = jnp.maximum(h2.astype(cd) + b2_ref[...], 0.0)    # (tile_b, hidden), cd

    # Layer 3, emitted transposed:  out_t = w3^T @ h2^T  -> (out_pad, tile_b).
    # Same contraction as jnp.dot(a, b.T) (the standard MXU pattern); no
    # materialized transpose, and the batch lands on the dense lane axis so the
    # store below is unmasked and only out_dim (=3) rows go back to HBM.
    out_t = jax.lax.dot_general(
        w3t_ref[...], h2.astype(w3t_ref.dtype),
        dimension_numbers=(((1,), (1,)), ((), ())),
        preferred_element_type=jnp.float32) + b3t_ref[...]   # + (out_pad, 1)
    o_ref[...] = out_t[:o_ref.shape[0], :].astype(o_ref.dtype)


def prepare_params(params, compute_dtype=None):
    """One-time host-side prep:
      * w2 -> bf16 (MXU-native input, half the weight DMA),
      * w3 -> bf16, transposed and padded to (out_pad=128, hidden) so layer 3
        can emit a transposed, lane-dense-on-batch output,
      * small VPU-side params (w1, b1, b2) -> compute dtype (bf16 on v6e/v7x,
        f32 on v5e),
      * b3 kept in f32, reshaped to (out_pad, 1) for the transposed bias add."""
    if compute_dtype is None:
        compute_dtype = _default_compute_dtype()
    w1, b1, w2, b2, w3, b3 = params
    out_dim = w3.shape[1]
    out_pad = pl.cdiv(out_dim, LANE) * LANE
    w3t = jnp.zeros((out_pad, w3.shape[0]), jnp.float32).at[:out_dim, :].set(w3.T)
    b3t = jnp.zeros((out_pad, 1), jnp.float32).at[:out_dim, :].set(
        b3.reshape(out_dim, 1))
    return (w1.astype(compute_dtype), b1.astype(compute_dtype),
            w2.astype(jnp.bfloat16), b2.astype(compute_dtype),
            w3t.astype(jnp.bfloat16), b3t.astype(jnp.float32), out_dim)


def policy_net_forward(x, prepared, *, tile_b=None):
    """Full PolicyNet forward in one pallas_call, batch-tiled over a 1-D grid."""
    w1, b1, w2, b2, w3t, b3t, out_dim = prepared
    batch, in_dim = x.shape
    hidden = w1.shape[1]
    out_pad = w3t.shape[0]

    if tile_b is None:
        tile_b = _pick_tile_b(batch)

    # Pad the batch to a whole number of tiles (padded rows compute garbage
    # from the zero rows and are sliced off below).
    b_pad = pl.cdiv(batch, tile_b) * tile_b
    if b_pad != batch:
        x = jnp.pad(x, ((0, b_pad - batch), (0, 0)))

    num_steps = b_pad // tile_b
    resident = lambda i: (0, 0)   # same block every grid step -> DMA'd once

    param_bytes = sum(int(a.size) * a.dtype.itemsize
                      for a in (w1, b1, w2, b2, w3t, b3t))
    cost = pl.CostEstimate(
        flops=2 * b_pad * (in_dim * hidden + hidden * hidden + hidden * out_pad),
        transcendentals=0,
        bytes_accessed=int(x.size) * x.dtype.itemsize
                       + out_dim * b_pad * 4 + param_bytes,
    )

    out_t = pl.pallas_call(
        mlp_kernel,
        out_shape=jax.ShapeDtypeStruct((out_dim, b_pad), jnp.float32),
        grid_spec=pltpu.PrefetchScalarGridSpec(
            num_scalar_prefetch=0,
            grid=(num_steps,),
            in_specs=[
                pl.BlockSpec((tile_b, in_dim), lambda i: (i, 0)),  # x streams
                pl.BlockSpec((in_dim, hidden), resident),          # w1
                pl.BlockSpec((1, hidden), resident),               # b1
                pl.BlockSpec((hidden, hidden), resident),          # w2 (bf16)
                pl.BlockSpec((1, hidden), resident),               # b2
                pl.BlockSpec((out_pad, hidden), resident),         # w3^T (bf16, padded)
                pl.BlockSpec((out_pad, 1), resident),              # b3^T (f32, padded)
            ],
            out_specs=pl.BlockSpec((out_dim, tile_b), lambda i: (0, i)),
        ),
        compiler_params=pltpu.CompilerParams(
            dimension_semantics=_batch_dim_semantics(num_steps),
        ),
        cost_estimate=cost,
    )(x, w1, b1, w2, b2, w3t, b3t)

    # (out_dim, b_pad) -> (batch, out_dim); only 3*batch floats are touched.
    return out_t[:, :batch].T


def init_policy_net_params(key, input_size, output_size, hidden=HIDDEN):
    """Deterministic init mimicking PyTorch's nn.Linear default:
    U(-1/sqrt(fan_in), 1/sqrt(fan_in)) for both weight and bias."""
    def linear(k, fan_in, fan_out):
        kw, kb = jax.random.split(k)
        bound = 1.0 / math.sqrt(fan_in)
        w = jax.random.uniform(kw, (fan_in, fan_out), jnp.float32, -bound, bound)
        b = jax.random.uniform(kb, (1, fan_out), jnp.float32, -bound, bound)
        return w, b

    k1, k2, k3 = jax.random.split(key, 3)
    w1, b1 = linear(k1, input_size, hidden)
    w2, b2 = linear(k2, hidden, hidden)
    w3, b3 = linear(k3, hidden, output_size)
    return (w1, b1, w2, b2, w3, b3)


def policy_net_ref(x, params):
    """Plain-JAX f32 reference for correctness checking."""
    w1, b1, w2, b2, w3, b3 = params
    h1 = jnp.maximum(x @ w1 + b1, 0.0)
    h2 = jnp.maximum(h1 @ w2 + b2, 0.0)
    return h2 @ w3 + b3


if __name__ == "__main__":
    input_size = 2
    output_size = 3
    batch = 500  # pads to 512 -> 2 grid steps of 256 rows; exercises padding

    key = jax.random.PRNGKey(0)
    k_params, k_x = jax.random.split(key)

    params = init_policy_net_params(k_params, input_size, output_size)
    prepared = prepare_params(params)
    x = jax.random.normal(k_x, (batch, input_size), dtype=jnp.float32)

    out = jax.block_until_ready(policy_net_forward(x, prepared))
    ref = policy_net_ref(x, params)

    assert out.shape == (batch, output_size), out.shape
    # w2/w3 (and, on v6e/v7x, the elementwise epilogues) run in bf16 ->
    # loosened tolerance vs the pure-f32 reference; f32 MXU accumulation keeps
    # the error small.
    assert jnp.allclose(out, ref, atol=5e-2, rtol=5e-2), (
        "mismatch vs reference; max abs err = "
        f"{float(jnp.max(jnp.abs(out - ref)))}")

    print("KERNEL_OK")
</pallas_src>

<mosaic_0001>
module attributes {stable_mosaic.version = 11 : i64} {
  func.func @mlp_kernel(%arg0: i32, %arg1: memref<256x2xf32, #tpu.memory_space<vmem>>, %arg2: memref<2x256xbf16, #tpu.memory_space<vmem>>, %arg3: memref<1x256xbf16, #tpu.memory_space<vmem>>, %arg4: memref<256x256xbf16, #tpu.memory_space<vmem>>, %arg5: memref<1x256xbf16, #tpu.memory_space<vmem>>, %arg6: memref<128x256xbf16, #tpu.memory_space<vmem>>, %arg7: memref<128x1xf32, #tpu.memory_space<vmem>>, %arg8: memref<3x256xf32, #tpu.memory_space<vmem>>) attributes {dimension_semantics = [#tpu.dimension_semantics<parallel>], iteration_bounds = array<i64: 2>, scalar_prefetch = 0 : i64, scratch_operands = 0 : i64, tpu.core_type = #tpu.core_type<tc>, window_params = [{transform_indices = @transform_0, window_bounds = array<i64: 256, 2>}, {pipeline_mode = #tpu.pipeline_mode<synchronous>, transform_indices = @transform_1, window_bounds = array<i64: 2, 256>}, {pipeline_mode = #tpu.pipeline_mode<synchronous>, transform_indices = @transform_2, window_bounds = array<i64: 1, 256>}, {pipeline_mode = #tpu.pipeline_mode<synchronous>, transform_indices = @transform_3, window_bounds = array<i64: 256, 256>}, {pipeline_mode = #tpu.pipeline_mode<synchronous>, transform_indices = @transform_4, window_bounds = array<i64: 1, 256>}, {pipeline_mode = #tpu.pipeline_mode<synchronous>, transform_indices = @transform_5, window_bounds = array<i64: 128, 256>}, {pipeline_mode = #tpu.pipeline_mode<synchronous>, transform_indices = @transform_6, window_bounds = array<i64: 128, 1>}, {transform_indices = @transform_7, window_bounds = array<i64: 3, 256>}]} {
    %c0 = arith.constant 0 : index
    %c0_0 = arith.constant 0 : index
    %0 = vector.load %arg1[%c0, %c0_0] : memref<256x2xf32, #tpu.memory_space<vmem>>, vector<256x2xf32>
    %1 = arith.truncf %0 : vector<256x2xf32> to vector<256x2xbf16>
    %c0_1 = arith.constant 0 : index
    %c0_2 = arith.constant 0 : index
    %2 = vector.load %arg2[%c0_1, %c0_2] : memref<2x256xbf16, #tpu.memory_space<vmem>>, vector<2x256xbf16>
    %3 = vector.extract_strided_slice %1 {offsets = [0, 0], sizes = [256, 1], strides = [1, 1]} : vector<256x2xbf16> to vector<256x1xbf16>
    %4 = vector.extract_strided_slice %2 {offsets = [0, 0], sizes = [1, 256], strides = [1, 1]} : vector<2x256xbf16> to vector<1x256xbf16>
    %5 = vector.broadcast %3 : vector<256x1xbf16> to vector<256x256xbf16>
    %6 = vector.broadcast %4 : vector<1x256xbf16> to vector<256x256xbf16>
    %7 = arith.mulf %5, %6 : vector<256x256xbf16>
    %8 = vector.extract_strided_slice %1 {offsets = [0, 1], sizes = [256, 1], strides = [1, 1]} : vector<256x2xbf16> to vector<256x1xbf16>
    %9 = vector.extract_strided_slice %2 {offsets = [1, 0], sizes = [1, 256], strides = [1, 1]} : vector<2x256xbf16> to vector<1x256xbf16>
    %10 = vector.broadcast %8 : vector<256x1xbf16> to vector<256x256xbf16>
    %11 = vector.broadcast %9 : vector<1x256xbf16> to vector<256x256xbf16>
    %12 = arith.mulf %10, %11 : vector<256x256xbf16>
    %13 = arith.addf %7, %12 : vector<256x256xbf16>
    %c0_3 = arith.constant 0 : index
    %c0_4 = arith.constant 0 : index
    %14 = vector.load %arg3[%c0_3, %c0_4] : memref<1x256xbf16, #tpu.memory_space<vmem>>, vector<1x256xbf16>
    %15 = vector.broadcast %14 : vector<1x256xbf16> to vector<256x256xbf16>
    %16 = arith.addf %13, %15 : vector<256x256xbf16>
    %cst = arith.constant 0.000000e+00 : bf16
    %17 = vector.broadcast %cst : bf16 to vector<256x256xbf16>
    %18 = arith.maximumf %16, %17 : vector<256x256xbf16>
    %c0_5 = arith.constant 0 : index
    %c0_6 = arith.constant 0 : index
    %19 = vector.load %arg4[%c0_5, %c0_6] : memref<256x256xbf16, #tpu.memory_space<vmem>>, vector<256x256xbf16>
    %cst_7 = arith.constant dense<0.000000e+00> : vector<256x256xf32>
    %20 = tpu.matmul %18, %19, %cst_7 {dimension_numbers = #tpu.dot_dimension_numbers<[1], [0], [0], [1], [0, 0, 1, 1], [], []>} : vector<256x256xbf16>, vector<256x256xbf16>, vector<256x256xf32> -> vector<256x256xf32>
    %21 = arith.truncf %20 : vector<256x256xf32> to vector<256x256xbf16>
    %c0_8 = arith.constant 0 : index
    %c0_9 = arith.constant 0 : index
    %22 = vector.load %arg5[%c0_8, %c0_9] : memref<1x256xbf16, #tpu.memory_space<vmem>>, vector<1x256xbf16>
    %23 = vector.broadcast %22 : vector<1x256xbf16> to vector<256x256xbf16>
    %24 = arith.addf %21, %23 : vector<256x256xbf16>
    %cst_10 = arith.constant 0.000000e+00 : bf16
    %25 = vector.broadcast %cst_10 : bf16 to vector<256x256xbf16>
    %26 = arith.maximumf %24, %25 : vector<256x256xbf16>
    %c0_11 = arith.constant 0 : index
    %c0_12 = arith.constant 0 : index
    %27 = vector.load %arg6[%c0_11, %c0_12] : memref<128x256xbf16, #tpu.memory_space<vmem>>, vector<128x256xbf16>
    %cst_13 = arith.constant dense<0.000000e+00> : vector<128x256xf32>
    %28 = tpu.matmul %27, %26, %cst_13 {dimension_numbers = #tpu.dot_dimension_numbers<[1], [1], [0], [0], [0, 0, 1, 0], [], []>} : vector<128x256xbf16>, vector<256x256xbf16>, vector<128x256xf32> -> vector<128x256xf32>
    %c0_14 = arith.constant 0 : index
    %c0_15 = arith.constant 0 : index
    %29 = vector.load %arg7[%c0_14, %c0_15] : memref<128x1xf32, #tpu.memory_space<vmem>>, vector<128x1xf32>
    %30 = vector.broadcast %29 : vector<128x1xf32> to vector<128x256xf32>
    %31 = arith.addf %28, %30 : vector<128x256xf32>
    %32 = vector.extract_strided_slice %31 {offsets = [0, 0], sizes = [3, 256], strides = [1, 1]} : vector<128x256xf32> to vector<3x256xf32>
    %c0_16 = arith.constant 0 : index
    %c0_17 = arith.constant 0 : index
    %33 = vector.load %arg8[%c0_16, %c0_17] : memref<3x256xf32, #tpu.memory_space<vmem>>, vector<3x256xf32>
    tpu.vector_store %arg8[%c0_16, %c0_17], %32 {strides = array<i32>} : memref<3x256xf32, #tpu.memory_space<vmem>>, vector<3x256xf32>,
    return
  }
  func.func @transform_0(%arg0: i32) -> (i32, i32) {
    %c0_i32 = arith.constant 0 : i32
    %c0_i32_0 = arith.constant 0 : i32
    return %arg0, %c0_i32 : i32, i32
  }
  func.func @transform_1(%arg0: i32) -> (i32, i32) {
    %c0_i32 = arith.constant 0 : i32
    %c0_i32_0 = arith.constant 0 : i32
    %c0_i32_1 = arith.constant 0 : i32
    return %c0_i32, %c0_i32_0 : i32, i32
  }
  func.func @transform_2(%arg0: i32) -> (i32, i32) {
    %c0_i32 = arith.constant 0 : i32
    %c0_i32_0 = arith.constant 0 : i32
    %c0_i32_1 = arith.constant 0 : i32
    return %c0_i32, %c0_i32_0 : i32, i32
  }
  func.func @transform_3(%arg0: i32) -> (i32, i32) {
    %c0_i32 = arith.constant 0 : i32
    %c0_i32_0 = arith.constant 0 : i32
    %c0_i32_1 = arith.constant 0 : i32
    return %c0_i32, %c0_i32_0 : i32, i32
  }
  func.func @transform_4(%arg0: i32) -> (i32, i32) {
    %c0_i32 = arith.constant 0 : i32
    %c0_i32_0 = arith.constant 0 : i32
    %c0_i32_1 = arith.constant 0 : i32
    return %c0_i32, %c0_i32_0 : i32, i32
  }
  func.func @transform_5(%arg0: i32) -> (i32, i32) {
    %c0_i32 = arith.constant 0 : i32
    %c0_i32_0 = arith.constant 0 : i32
    %c0_i32_1 = arith.constant 0 : i32
    return %c0_i32, %c0_i32_0 : i32, i32
  }
  func.func @transform_6(%arg0: i32) -> (i32, i32) {
    %c0_i32 = arith.constant 0 : i32
    %c0_i32_0 = arith.constant 0 : i32
    %c0_i32_1 = arith.constant 0 : i32
    return %c0_i32, %c0_i32_0 : i32, i32
  }
  func.func @transform_7(%arg0: i32) -> (i32, i32) {
    %c0_i32 = arith.constant 0 : i32
    %c0_i32_0 = arith.constant 0 : i32
    return %c0_i32, %arg0 : i32, i32
  }
}

</mosaic_0001>

<llo_original>
// kernel: tpu_custom_call.1
$region0: #{tpu_custom_call.1}
  #allocation0 [shape = 'u32[]', space=smem, size = 0x4, offset = 0x4, fixed_abs, tag = 'smem constant byte address 0x4 - core index']
  #allocation1 [shape = 'u32[144,128]{1,0:T(1,128)}', space=vmem, size = 0x12000, scoped, tag = 'internal scratch']
  %s0 = inlined_call_operand.vmem [shape: f32[512,2], index: 0, kind: input, shape index: {}]
  %s1 = inlined_call_operand.vmem [shape: bf16[2,256], index: 1, kind: input, shape index: {}]
  %s2 = inlined_call_operand.vmem [shape: bf16[1,256], index: 2, kind: input, shape index: {}]
  %s3 = inlined_call_operand.vmem [shape: bf16[256,256], index: 3, kind: input, shape index: {}]
  %s4 = inlined_call_operand.vmem [shape: bf16[1,256], index: 4, kind: input, shape index: {}]
  %s5 = inlined_call_operand.vmem [shape: bf16[128,256], index: 5, kind: input, shape index: {}]
  %s6 = inlined_call_operand.vmem [shape: f32[128,1], index: 6, kind: input, shape index: {}]
  %s7 = inlined_call_operand.hbm [shape: f32[3,512], index: 7, kind: output, shape index: {}]
  %s8 = sld [smem:[#allocation0]]
  $region61: #{tpu_custom_call.1} parent=0
    _
  %s10 = ssub.s32 1, %s8
  %s11 = scalar_select 0, %s10, %s8
  $region1: #{tpu_custom_call.1} parent=0
    #allocation2 [shape = 'u8[8192]{0}', space=vmem, size = 0x2000, scoped, tag = 'output window, operand 0']
    #allocation3 [shape = 's32[2]{0}', space=sflag, size = 0x8, scoped, tag = 'scoped memory for tpu_custom_call.1']
    %12 = vsyncpa [#allocation3], 0
    %s13 = scalar_lea.sflag [#allocation3], 1
    %14 = vsyncpa %s13, 0
    loop: start=0, step=1, limit=4
    $region2: #{tpu_custom_call.1} parent=1 // loop_pre_header
      _
    $region3: #{tpu_custom_call.1} parent=1 // loop_header
      %s16 = sphi 0, %s20
      %p17 = scmp.ge.s32.totalorder %s16, 4
      %s26 = sphi 0, %s28
      %s29 = sphi 0, %s26
      %s30 = sphi 0, %s29
      %s46 = sphi 0, %s30
      %s50 = sphi 0, %s50
      %s52 = sphi 0, %s50
      %s53 = sphi 0, %s52
      %s67 = sphi 0, %s53
      %s71 = sphi 0, %s71
      %s73 = sphi 0, %s71
      %s74 = sphi 0, %s73
      %s88 = sphi 0, %s74
      %s92 = sphi 0, %s92
      %s94 = sphi 0, %s92
      %s95 = sphi 0, %s94
      %s109 = sphi 0, %s95
      %s113 = sphi 0, %s113
      %s115 = sphi 0, %s113
      %s116 = sphi 0, %s115
      %s130 = sphi 0, %s116
      %s134 = sphi 0, %s134
      %s136 = sphi 0, %s134
      %s137 = sphi 0, %s136
      %s151 = sphi 0, %s137
      %s155 = sphi 0, %s155
      %s157 = sphi 0, %s155
      %s158 = sphi 0, %s157
      %s172 = sphi 0, %s158
      %s178 = sphi 0, %s180
      %s181 = sphi 0, %s178
      %s182 = sphi 0, %s181
      %s198 = sphi 0, %s182
    $region4: #{tpu_custom_call.1} parent=1 // loop_header_branch
      %19 = sbr.rel (%p17) target = $region8
    $region5: #{tpu_custom_call.1} parent=1 // loop_body
      %s21 = ssub.s32 %s16, 1
      %s22 = ssub.s32 %s16, 2
      %s23 = sadd.s32 %s16, 1
      %s24 = ssub.s32 %s16, %s23
      %p25 = scmp.eq.s32.totalorder %s24, 0
      %s27 = sadd.s32 %s26, 1
      %s28 = scalar_select %p25, %s26, %s27
      %p31 = pneg %p25
      %p32 = scmp.eq.s32.totalorder %s16, 1
      %p33 = por %p31, %p32
      %p34 = scmp.ne.s32.totalorder %s26, %s29
      %p35 = scmp.eq.s32.totalorder %s16, 0
      %p36 = por %p34, %p35
      %p37 = scmp.ne.s32.totalorder %s26, %s29
      %p38 = scmp.eq.s32.totalorder %s21, 1
      %p39 = por %p37, %p38
      %p40 = scmp.ne.s32.totalorder %s29, %s30
      %p41 = scmp.eq.s32.totalorder %s21, 0
      %p42 = por %p40, %p41
      %p43 = scmp.ne.s32.totalorder %s29, %s30
      %p44 = scmp.eq.s32.totalorder %s22, 1
      %p45 = por %p43, %p44
      %p47 = scmp.ne.s32.totalorder %s30, %s46
      %p48 = scmp.eq.s32.totalorder %s22, 0
      %p49 = por %p47, %p48
      %s51 = sadd.s32 %s50, 1
      %p54 = scmp.eq.s32.totalorder %s16, 1
      %p55 = scmp.ne.s32.totalorder %s50, %s52
      %p56 = scmp.eq.s32.totalorder %s16, 0
      %p57 = por %p55, %p56
      %p58 = scmp.ne.s32.totalorder %s50, %s52
      %p59 = scmp.eq.s32.totalorder %s21, 1
      %p60 = por %p58, %p59
      %p61 = scmp.ne.s32.totalorder %s52, %s53
      %p62 = scmp.eq.s32.totalorder %s21, 0
      %p63 = por %p61, %p62
      %p64 = scmp.ne.s32.totalorder %s52, %s53
      %p65 = scmp.eq.s32.totalorder %s22, 1
      %p66 = por %p64, %p65
      %p68 = scmp.ne.s32.totalorder %s53, %s67
      %p69 = scmp.eq.s32.totalorder %s22, 0
      %p70 = por %p68, %p69
      %s72 = sadd.s32 %s71, 1
      %p75 = scmp.eq.s32.totalorder %s16, 1
      %p76 = scmp.ne.s32.totalorder %s71, %s73
      %p77 = scmp.eq.s32.totalorder %s16, 0
      %p78 = por %p76, %p77
      %p79 = scmp.ne.s32.totalorder %s71, %s73
      %p80 = scmp.eq.s32.totalorder %s21, 1
      %p81 = por %p79, %p80
      %p82 = scmp.ne.s32.totalorder %s73, %s74
      %p83 = scmp.eq.s32.totalorder %s21, 0
      %p84 = por %p82, %p83
      %p85 = scmp.ne.s32.totalorder %s73, %s74
      %p86 = scmp.eq.s32.totalorder %s22, 1
      %p87 = por %p85, %p86
      %p89 = scmp.ne.s32.totalorder %s74, %s88
      %p90 = scmp.eq.s32.totalorder %s22, 0
      %p91 = por %p89, %p90
      %s93 = sadd.s32 %s92, 1
      %p96 = scmp.eq.s32.totalorder %s16, 1
      %p97 = scmp.ne.s32.totalorder %s92, %s94
      %p98 = scmp.eq.s32.totalorder %s16, 0
      %p99 = por %p97, %p98
      %p100 = scmp.ne.s32.totalorder %s92, %s94
      %p101 = scmp.eq.s32.totalorder %s21, 1
      %p102 = por %p100, %p101
      %p103 = scmp.ne.s32.totalorder %s94, %s95
      %p104 = scmp.eq.s32.totalorder %s21, 0
      %p105 = por %p103, %p104
      %p106 = scmp.ne.s32.totalorder %s94, %s95
      %p107 = scmp.eq.s32.totalorder %s22, 1
      %p108 = por %p106, %p107
      %p110 = scmp.ne.s32.totalorder %s95, %s109
      %p111 = scmp.eq.s32.totalorder %s22, 0
      %p112 = por %p110, %p111
      %s114 = sadd.s32 %s113, 1
      %p117 = scmp.eq.s32.totalorder %s16, 1
      %p118 = scmp.ne.s32.totalorder %s113, %s115
      %p119 = scmp.eq.s32.totalorder %s16, 0
      %p120 = por %p118, %p119
      %p121 = scmp.ne.s32.totalorder %s113, %s115
      %p122 = scmp.eq.s32.totalorder %s21, 1
      %p123 = por %p121, %p122
      %p124 = scmp.ne.s32.totalorder %s115, %s116
      %p125 = scmp.eq.s32.totalorder %s21, 0
      %p126 = por %p124, %p125
      %p127 = scmp.ne.s32.totalorder %s115, %s116
      %p128 = scmp.eq.s32.totalorder %s22, 1
      %p129 = por %p127, %p128
      %p131 = scmp.ne.s32.totalorder %s116, %s130
      %p132 = scmp.eq.s32.totalorder %s22, 0
      %p133 = por %p131, %p132
      %s135 = sadd.s32 %s134, 1
      %p138 = scmp.eq.s32.totalorder %s16, 1
      %p139 = scmp.ne.s32.totalorder %s134, %s136
      %p140 = scmp.eq.s32.totalorder %s16, 0
      %p141 = por %p139, %p140
      %p142 = scmp.ne.s32.totalorder %s134, %s136
      %p143 = scmp.eq.s32.totalorder %s21, 1
      %p144 = por %p142, %p143
      %p145 = scmp.ne.s32.totalorder %s136, %s137
      %p146 = scmp.eq.s32.totalorder %s21, 0
      %p147 = por %p145, %p146
      %p148 = scmp.ne.s32.totalorder %s136, %s137
      %p149 = scmp.eq.s32.totalorder %s22, 1
      %p150 = por %p148, %p149
      %p152 = scmp.ne.s32.totalorder %s137, %s151
      %p153 = scmp.eq.s32.totalorder %s22, 0
      %p154 = por %p152, %p153
      %s156 = sadd.s32 %s155, 1
      %p159 = scmp.eq.s32.totalorder %s16, 1
      %p160 = scmp.ne.s32.totalorder %s155, %s157
      %p161 = scmp.eq.s32.totalorder %s16, 0
      %p162 = por %p160, %p161
      %p163 = scmp.ne.s32.totalorder %s155, %s157
      %p164 = scmp.eq.s32.totalorder %s21, 1
      %p165 = por %p163, %p164
      %p166 = scmp.ne.s32.totalorder %s157, %s158
      %p167 = scmp.eq.s32.totalorder %s21, 0
      %p168 = por %p166, %p167
      %p169 = scmp.ne.s32.totalorder %s157, %s158
      %p170 = scmp.eq.s32.totalorder %s22, 1
      %p171 = por %p169, %p170
      %p173 = scmp.ne.s32.totalorder %s158, %s172
      %p174 = scmp.eq.s32.totalorder %s22, 0
      %p175 = por %p173, %p174
      %s176 = ssub.s32 %s16, %s23
      %p177 = scmp.eq.s32.totalorder %s176, 0
      %s179 = sadd.s32 %s178, 1
      %s180 = scalar_select %p177, %s178, %s179
      %p183 = pneg %p177
      %p184 = scmp.eq.s32.totalorder %s16, 1
      %p185 = por %p183, %p184
      %p186 = scmp.ne.s32.totalorder %s178, %s181
      %p187 = scmp.eq.s32.totalorder %s16, 0
      %p188 = por %p186, %p187
      %p189 = scmp.ne.s32.totalorder %s178, %s181
      %p190 = scmp.eq.s32.totalorder %s21, 1
      %p191 = por %p189, %p190
      %p192 = scmp.ne.s32.totalorder %s181, %s182
      %p193 = scmp.eq.s32.totalorder %s21, 0
      %p194 = por %p192, %p193
      %p195 = scmp.ne.s32.totalorder %s181, %s182
      %p196 = scmp.eq.s32.totalorder %s22, 1
      %p197 = por %p195, %p196
      %p199 = scmp.ne.s32.totalorder %s182, %s198
      %p200 = scmp.eq.s32.totalorder %s22, 0
      %p201 = por %p199, %p200
      %p202 = scmp.le.s32.totalorder 1, %s16
      %p203 = scmp.lt.s32.totalorder %s16, 3
      %p204 = pnand %p202, %p203
      %p205 = pneg %p204
      // Predicated region
      $region9: #{tpu_custom_call.1} parent=5 // pred_check
        _
      $region10: #{tpu_custom_call.1} parent=5 // pred_check_branch
        %207 = sbr.rel (%p204) target = $region12
      $region11: #{tpu_custom_call.1} parent=5 // pred_region
        %s208 = ssub.s32 %s16, 1
        // Predicated region
        $region13: #{tpu_custom_call.1} parent=11 // pred_check
          %p209 = pneg %p63
        $region14: #{tpu_custom_call.1} parent=11 // pred_check_branch
          %211 = sbr.rel (%p209) target = $region16
        $region15: #{tpu_custom_call.1} parent=11 // pred_region
          _
        $region16: #{tpu_custom_call.1} parent=11 // pred_fallthru
          _
        // Predicated region
        $region17: #{tpu_custom_call.1} parent=11 // pred_check
          %p212 = pneg %p84
        $region18: #{tpu_custom_call.1} parent=11 // pred_check_branch
          %214 = sbr.rel (%p212) target = $region20
        $region19: #{tpu_custom_call.1} parent=11 // pred_region
          _
        $region20: #{tpu_custom_call.1} parent=11 // pred_fallthru
          _
        // Predicated region
        $region21: #{tpu_custom_call.1} parent=11 // pred_check
          %p215 = pneg %p105
        $region22: #{tpu_custom_call.1} parent=11 // pred_check_branch
          %217 = sbr.rel (%p215) target = $region24
        $region23: #{tpu_custom_call.1} parent=11 // pred_region
          _
        $region24: #{tpu_custom_call.1} parent=11 // pred_fallthru
          _
        // Predicated region
        $region25: #{tpu_custom_call.1} parent=11 // pred_check
          %p218 = pneg %p126
        $region26: #{tpu_custom_call.1} parent=11 // pred_check_branch
          %220 = sbr.rel (%p218) target = $region28
        $region27: #{tpu_custom_call.1} parent=11 // pred_region
          _
        $region28: #{tpu_custom_call.1} parent=11 // pred_fallthru
          _
        // Predicated region
        $region29: #{tpu_custom_call.1} parent=11 // pred_check
          %p221 = pneg %p147
        $region30: #{tpu_custom_call.1} parent=11 // pred_check_branch
          %223 = sbr.rel (%p221) target = $region32
        $region31: #{tpu_custom_call.1} parent=11 // pred_region
          _
        $region32: #{tpu_custom_call.1} parent=11 // pred_fallthru
          _
        // Predicated region
        $region33: #{tpu_custom_call.1} parent=11 // pred_check
          %p224 = pneg %p168
        $region34: #{tpu_custom_call.1} parent=11 // pred_check_branch
          %226 = sbr.rel (%p224) target = $region36
        $region35: #{tpu_custom_call.1} parent=11 // pred_region
          _
        $region36: #{tpu_custom_call.1} parent=11 // pred_fallthru
          _
      $region12: #{tpu_custom_call.1} parent=5 // pred_fallthru
        _
      %p227 = scmp.lt.s32.totalorder %s16, 2
      // Predicated region
      $region37: #{tpu_custom_call.1} parent=5 // pred_check
        %p228 = pneg %p227
      $region38: #{tpu_custom_call.1} parent=5 // pred_check_branch
        %230 = sbr.rel (%p228) target = $region40
      $region39: #{tpu_custom_call.1} parent=5 // pred_region
        // Predicated region
        $region41: #{tpu_custom_call.1} parent=39 // pred_check
          %p231 = pneg %p36
        $region42: #{tpu_custom_call.1} parent=39 // pred_check_branch
          %233 = sbr.rel (%p231) target = $region44
        $region43: #{tpu_custom_call.1} parent=39 // pred_region
          %s234 = smul.u32 32, %s16
          %p235 = scmp.lt.s32.totalorder %s234, 63
          %s236 = scalar_select %p235, %s234, 63
          %s237 = smul.addr %s236, 8
          %s238 = scalar_lea.vmem %s0, %s237
          %s239 = smul.u32 32, %s16
        $region44: #{tpu_custom_call.1} parent=39 // pred_fallthru
          _
      $region40: #{tpu_custom_call.1} parent=5 // pred_fallthru
        _
      %p240 = scmp.le.s32.totalorder 1, %s16
      %p241 = scmp.lt.s32.totalorder %s16, 3
      %p242 = pnand %p240, %p241
      %p243 = pneg %p242
      // Predicated region
      $region45: #{tpu_custom_call.1} parent=5 // pred_check
        _
      $region46: #{tpu_custom_call.1} parent=5 // pred_check_branch
        %245 = sbr.rel (%p242) target = $region48
      $region47: #{tpu_custom_call.1} parent=5 // pred_region
        %s246 = ssub.s32 %s16, 1
        %s247 = smul.u32 32, %s21
        %p248 = scmp.lt.s32.totalorder %s247, 63
        %s249 = scalar_select %p248, %s247, 63
        %s250 = smul.addr %s249, 8
        %s251 = scalar_lea.vmem %s0, %s250
        %p252 = pneg %p42
        %p253 = pneg %p39
        %p254 = pneg %p63
        %p255 = pneg %p60
        %p256 = pneg %p84
        %p257 = pneg %p81
        %p258 = pneg %p105
        %p259 = pneg %p102
        %p260 = pneg %p126
        %p261 = pneg %p123
        %p262 = pneg %p147
        %p263 = pneg %p144
        %p264 = pneg %p168
        %p265 = pneg %p165
        %p266 = pneg %p194
        %p267 = pneg %p191
        %s268 = sand.u32 %s181, 1
        %s269 = scalar_lea.sflag [#allocation3], %s268
        %s270 = sand.u32 %s181, 1
        %s271 = smul.addr %s270, 8
        %s272 = scalar_lea.vmem [#allocation2], %s271
        %s273 = smul.u32 32, %s21
        %p274 = scmp.lt.s32.totalorder %s273, 63
        %s275 = scalar_select %p274, %s273, 63
        %s276 = smul.addr %s275, 8
        %s277 = scalar_lea.vmem %s0, %s276
        %s278 = smul.u32 32, %s21
        %s279 = smul.u32 2, %s21
        %v281 = vld [vmem:[%s277] sm:$0xff]
        %v282 = vld [vmem:[%s277 + $0x8] sm:$0xff]
        %v283 = vld [vmem:[%s277 + $0x10] sm:$0xff]
        %v284 = vld [vmem:[%s277 + $0x18] sm:$0xff]
        %v285 = vld [vmem:[%s277 + $0x20] sm:$0xff]
        %v286 = vld [vmem:[%s277 + $0x28] sm:$0xff]
        %v287 = vld [vmem:[%s277 + $0x30] sm:$0xff]
        %v288 = vld [vmem:[%s277 + $0x38] sm:$0xff]
        %v289 = vld [vmem:[%s277 + $0x40] sm:$0xff]
        %v290 = vld [vmem:[%s277 + $0x48] sm:$0xff]
        %v291 = vld [vmem:[%s277 + $0x50] sm:$0xff]
        %v292 = vld [vmem:[%s277 + $0x58] sm:$0xff]
        %v293 = vld [vmem:[%s277 + $0x60] sm:$0xff]
        %v294 = vld [vmem:[%s277 + $0x68] sm:$0xff]
        %v295 = vld [vmem:[%s277 + $0x70] sm:$0xff]
        %v296 = vld [vmem:[%s277 + $0x78] sm:$0xff]
        %v297 = vld [vmem:[%s277 + $0x80] sm:$0xff]
        %v298 = vld [vmem:[%s277 + $0x88] sm:$0xff]
        %v299 = vld [vmem:[%s277 + $0x90] sm:$0xff]
        %v300 = vld [vmem:[%s277 + $0x98] sm:$0xff]
        %v301 = vld [vmem:[%s277 + $0xa0] sm:$0xff]
        %v302 = vld [vmem:[%s277 + $0xa8] sm:$0xff]
        %v303 = vld [vmem:[%s277 + $0xb0] sm:$0xff]
        %v304 = vld [vmem:[%s277 + $0xb8] sm:$0xff]
        %v305 = vld [vmem:[%s277 + $0xc0] sm:$0xff]
        %v306 = vld [vmem:[%s277 + $0xc8] sm:$0xff]
        %v307 = vld [vmem:[%s277 + $0xd0] sm:$0xff]
        %v308 = vld [vmem:[%s277 + $0xd8] sm:$0xff]
        %v309 = vld [vmem:[%s277 + $0xe0] sm:$0xff]
        %v310 = vld [vmem:[%s277 + $0xe8] sm:$0xff]
        %v311 = vld [vmem:[%s277 + $0xf0] sm:$0xff]
        %v312 = vld [vmem:[%s277 + $0xf8] sm:$0xff]
        %v313 = vpack.c.bf16 %v282, %v281
        %v314 = vpack.c.bf16 %v284, %v283
        %v315 = vpack.c.bf16 %v286, %v285
        %v316 = vpack.c.bf16 %v288, %v287
        %v317 = vpack.c.bf16 %v290, %v289
        %v318 = vpack.c.bf16 %v292, %v291
        %v319 = vpack.c.bf16 %v294, %v293
        %v320 = vpack.c.bf16 %v296, %v295
        %v321 = vpack.c.bf16 %v298, %v297
        %v322 = vpack.c.bf16 %v300, %v299
        %v323 = vpack.c.bf16 %v302, %v301
        %v324 = vpack.c.bf16 %v304, %v303
        %v325 = vpack.c.bf16 %v306, %v305
        %v326 = vpack.c.bf16 %v308, %v307
        %v327 = vpack.c.bf16 %v310, %v309
        %v328 = vpack.c.bf16 %v312, %v311
        %v329 = vld [vmem:[%s1] sm:$0x3]
        %331 = vset.pattern.permute.xlu0 0
        %332 = vperm.xlu0 %331, %v313
        %v333 = vpop.permute.xlu0 %332
        %336 = vset.pattern.permute.xlu0 0
        %337 = vperm.xlu0 %336, %v314
        %v338 = vpop.permute.xlu0 %337
        %341 = vset.pattern.permute.xlu0 0
        %342 = vperm.xlu0 %341, %v315
        %v343 = vpop.permute.xlu0 %342
        %346 = vset.pattern.permute.xlu0 0
        %347 = vperm.xlu0 %346, %v316
        %v348 = vpop.permute.xlu0 %347
        %351 = vset.pattern.permute.xlu0 0
        %352 = vperm.xlu0 %351, %v317
        %v353 = vpop.permute.xlu0 %352
        %356 = vset.pattern.permute.xlu0 0
        %357 = vperm.xlu0 %356, %v318
        %v358 = vpop.permute.xlu0 %357
        %361 = vset.pattern.permute.xlu0 0
        %362 = vperm.xlu0 %361, %v319
        %v363 = vpop.permute.xlu0 %362
        %366 = vset.pattern.permute.xlu0 0
        %367 = vperm.xlu0 %366, %v320
        %v368 = vpop.permute.xlu0 %367
        %371 = vset.pattern.permute.xlu0 0
        %372 = vperm.xlu0 %371, %v321
        %v373 = vpop.permute.xlu0 %372
        %376 = vset.pattern.permute.xlu0 0
        %377 = vperm.xlu0 %376, %v322
        %v378 = vpop.permute.xlu0 %377
        %381 = vset.pattern.permute.xlu0 0
        %382 = vperm.xlu0 %381, %v323
        %v383 = vpop.permute.xlu0 %382
        %386 = vset.pattern.permute.xlu0 0
        %387 = vperm.xlu0 %386, %v324
        %v388 = vpop.permute.xlu0 %387
        %391 = vset.pattern.permute.xlu0 0
        %392 = vperm.xlu0 %391, %v325
        %v393 = vpop.permute.xlu0 %392
        %396 = vset.pattern.permute.xlu0 0
        %397 = vperm.xlu0 %396, %v326
        %v398 = vpop.permute.xlu0 %397
        %401 = vset.pattern.permute.xlu0 0
        %402 = vperm.xlu0 %401, %v327
        %v403 = vpop.permute.xlu0 %402
        %406 = vset.pattern.permute.xlu0 0
        %407 = vperm.xlu0 %406, %v328
        %v408 = vpop.permute.xlu0 %407
        %v412 = vunpack.c.l.s4 1966171168
        %v413 = vunpack.c.0.s8 %v412
        %v414 = vlaneseq
        %v415 = vshrl.u32 %v414, 7
        %v416 = vsub.s32 %v413, %v415
        %v417 = vrot.slane %v329, %v416
        %v418 = vcombine.high %v417, %v417
        %v420 = vunpack.c.l.s4 1966171168
        %v421 = vunpack.c.0.s8 %v420
        %v422 = vlaneseq
        %v423 = vshrl.u32 %v422, 7
        %v424 = vsub.s32 %v421, %v423
        %v425 = vrot.slane %v417, %v424
        %v427 = vunpack.c.l.s4 1966171168
        %v428 = vunpack.c.0.s8 %v427
        %v429 = vlaneseq
        %v430 = vshrl.u32 %v429, 7
        %v431 = vsub.s32 %v428, %v430
        %v432 = vrot.slane %v418, %v431
        %v434 = vpack.i.b16 %v425, %v425
        %v436 = vlaneseq
        %v437 = vshrl.u32 %v436, 7
        %v438 = vsub.s32 0, %v437
        %v439 = vrot.slane %v434, %v438
        %v441 = vpack.i.b16 %v432, %v432
        %v443 = vlaneseq
        %v444 = vshrl.u32 %v443, 7
        %v445 = vsub.s32 0, %v444
        %v446 = vrot.slane %v441, %v445
        %v447 = vmul.bf16 %v333, %v439
        %v448 = vmul.bf16 %v333, %v446
        %v449 = vmul.bf16 %v338, %v439
        %v450 = vmul.bf16 %v338, %v446
        %v451 = vmul.bf16 %v343, %v439
        %v452 = vmul.bf16 %v343, %v446
        %v453 = vmul.bf16 %v348, %v439
        %v454 = vmul.bf16 %v348, %v446
        %v455 = vmul.bf16 %v353, %v439
        %v456 = vmul.bf16 %v353, %v446
        %v457 = vmul.bf16 %v358, %v439
        %v458 = vmul.bf16 %v358, %v446
        %v459 = vmul.bf16 %v363, %v439
        %v460 = vmul.bf16 %v363, %v446
        %v461 = vmul.bf16 %v368, %v439
        %v462 = vmul.bf16 %v368, %v446
        %v463 = vmul.bf16 %v373, %v439
        %v464 = vmul.bf16 %v373, %v446
        %v465 = vmul.bf16 %v378, %v439
        %v466 = vmul.bf16 %v378, %v446
        %v467 = vmul.bf16 %v383, %v439
        %v468 = vmul.bf16 %v383, %v446
        %v469 = vmul.bf16 %v388, %v439
        %v470 = vmul.bf16 %v388, %v446
        %v471 = vmul.bf16 %v393, %v439
        %v472 = vmul.bf16 %v393, %v446
        %v473 = vmul.bf16 %v398, %v439
        %v474 = vmul.bf16 %v398, %v446
        %v475 = vmul.bf16 %v403, %v439
        %v476 = vmul.bf16 %v403, %v446
        %v477 = vmul.bf16 %v408, %v439
        %v478 = vmul.bf16 %v408, %v446
        %479 = vset.pattern.permute.xlu0 1
        %480 = vperm.xlu0 %479, %v313
        %v481 = vpop.permute.xlu0 %480
        %483 = vset.pattern.permute.xlu0 1
        %484 = vperm.xlu0 %483, %v314
        %v485 = vpop.permute.xlu0 %484
        %487 = vset.pattern.permute.xlu0 1
        %488 = vperm.xlu0 %487, %v315
        %v489 = vpop.permute.xlu0 %488
        %491 = vset.pattern.permute.xlu0 1
        %492 = vperm.xlu0 %491, %v316
        %v493 = vpop.permute.xlu0 %492
        %495 = vset.pattern.permute.xlu0 1
        %496 = vperm.xlu0 %495, %v317
        %v497 = vpop.permute.xlu0 %496
        %499 = vset.pattern.permute.xlu0 1
        %500 = vperm.xlu0 %499, %v318
        %v501 = vpop.permute.xlu0 %500
        %503 = vset.pattern.permute.xlu0 1
        %504 = vperm.xlu0 %503, %v319
        %v505 = vpop.permute.xlu0 %504
        %507 = vset.pattern.permute.xlu0 1
        %508 = vperm.xlu0 %507, %v320
        %v509 = vpop.permute.xlu0 %508
        %511 = vset.pattern.permute.xlu0 1
        %512 = vperm.xlu0 %511, %v321
        %v513 = vpop.permute.xlu0 %512
        %515 = vset.pattern.permute.xlu0 1
        %516 = vperm.xlu0 %515, %v322
        %v517 = vpop.permute.xlu0 %516
        %519 = vset.pattern.permute.xlu0 1
        %520 = vperm.xlu0 %519, %v323
        %v521 = vpop.permute.xlu0 %520
        %523 = vset.pattern.permute.xlu0 1
        %524 = vperm.xlu0 %523, %v324
        %v525 = vpop.permute.xlu0 %524
        %527 = vset.pattern.permute.xlu0 1
        %528 = vperm.xlu0 %527, %v325
        %v529 = vpop.permute.xlu0 %528
        %531 = vset.pattern.permute.xlu0 1
        %532 = vperm.xlu0 %531, %v326
        %v533 = vpop.permute.xlu0 %532
        %535 = vset.pattern.permute.xlu0 1
        %536 = vperm.xlu0 %535, %v327
        %v537 = vpop.permute.xlu0 %536
        %539 = vset.pattern.permute.xlu0 1
        %540 = vperm.xlu0 %539, %v328
        %v541 = vpop.permute.xlu0 %540
        %v543 = vshrl.u32 %v425, 16
        %v544 = vpack.i.b16 %v543, %v543
        %v546 = vlaneseq
        %v547 = vshrl.u32 %v546, 7
        %v548 = vsub.s32 0, %v547
        %v549 = vrot.slane %v544, %v548
        %v550 = vshrl.u32 %v432, 16
        %v551 = vpack.i.b16 %v550, %v550
        %v553 = vlaneseq
        %v554 = vshrl.u32 %v553, 7
        %v555 = vsub.s32 0, %v554
        %v556 = vrot.slane %v551, %v555
        %v557 = vmul.bf16 %v481, %v549
        %v558 = vmul.bf16 %v481, %v556
        %v559 = vmul.bf16 %v485, %v549
        %v560 = vmul.bf16 %v485, %v556
        %v561 = vmul.bf16 %v489, %v549
        %v562 = vmul.bf16 %v489, %v556
        %v563 = vmul.bf16 %v493, %v549
        %v564 = vmul.bf16 %v493, %v556
        %v565 = vmul.bf16 %v497, %v549
        %v566 = vmul.bf16 %v497, %v556
        %v567 = vmul.bf16 %v501, %v549
        %v568 = vmul.bf16 %v501, %v556
        %v569 = vmul.bf16 %v505, %v549
        %v570 = vmul.bf16 %v505, %v556
        %v571 = vmul.bf16 %v509, %v549
        %v572 = vmul.bf16 %v509, %v556
        %v573 = vmul.bf16 %v513, %v549
        %v574 = vmul.bf16 %v513, %v556
        %v575 = vmul.bf16 %v517, %v549
        %v576 = vmul.bf16 %v517, %v556
        %v577 = vmul.bf16 %v521, %v549
        %v578 = vmul.bf16 %v521, %v556
        %v579 = vmul.bf16 %v525, %v549
        %v580 = vmul.bf16 %v525, %v556
        %v581 = vmul.bf16 %v529, %v549
        %v582 = vmul.bf16 %v529, %v556
        %v583 = vmul.bf16 %v533, %v549
        %v584 = vmul.bf16 %v533, %v556
        %v585 = vmul.bf16 %v537, %v549
        %v586 = vmul.bf16 %v537, %v556
        %v587 = vmul.bf16 %v541, %v549
        %v588 = vmul.bf16 %v541, %v556
        %v589 = vadd.bf16 %v447, %v557
        %v590 = vadd.bf16 %v448, %v558
        %v591 = vadd.bf16 %v449, %v559
        %v592 = vadd.bf16 %v450, %v560
        %v593 = vadd.bf16 %v451, %v561
        %v594 = vadd.bf16 %v452, %v562
        %v595 = vadd.bf16 %v453, %v563
        %v596 = vadd.bf16 %v454, %v564
        %v597 = vadd.bf16 %v455, %v565
        %v598 = vadd.bf16 %v456, %v566
        %v599 = vadd.bf16 %v457, %v567
        %v600 = vadd.bf16 %v458, %v568
        %v601 = vadd.bf16 %v459, %v569
        %v602 = vadd.bf16 %v460, %v570
        %v603 = vadd.bf16 %v461, %v571
        %v604 = vadd.bf16 %v462, %v572
        %v605 = vadd.bf16 %v463, %v573
        %v606 = vadd.bf16 %v464, %v574
        %v607 = vadd.bf16 %v465, %v575
        %v608 = vadd.bf16 %v466, %v576
        %v609 = vadd.bf16 %v467, %v577
        %v610 = vadd.bf16 %v468, %v578
        %v611 = vadd.bf16 %v469, %v579
        %v612 = vadd.bf16 %v470, %v580
        %v613 = vadd.bf16 %v471, %v581
        %v614 = vadd.bf16 %v472, %v582
        %v615 = vadd.bf16 %v473, %v583
        %v616 = vadd.bf16 %v474, %v584
        %v617 = vadd.bf16 %v475, %v585
        %v618 = vadd.bf16 %v476, %v586
        %v619 = vadd.bf16 %v477, %v587
        %v620 = vadd.bf16 %v478, %v588
        %v621 = vld [vmem:[%s2] sm:$0x3]
        %v624 = vunpack.c.l.s4 1966171168
        %v625 = vunpack.c.0.s8 %v624
        %v626 = vlaneseq
        %v627 = vshrl.u32 %v626, 7
        %v628 = vsub.s32 %v625, %v627
        %v629 = vrot.slane %v621, %v628
        %v630 = vcombine.high %v629, %v629
        %v632 = vunpack.c.l.s4 1966171168
        %v633 = vunpack.c.0.s8 %v632
        %v634 = vlaneseq
        %v635 = vshrl.u32 %v634, 7
        %v636 = vsub.s32 %v633, %v635
        %v637 = vrot.slane %v629, %v636
        %v639 = vunpack.c.l.s4 1966171168
        %v640 = vunpack.c.0.s8 %v639
        %v641 = vlaneseq
        %v642 = vshrl.u32 %v641, 7
        %v643 = vsub.s32 %v640, %v642
        %v644 = vrot.slane %v630, %v643
        %v646 = vpack.i.b16 %v637, %v637
        %v648 = vlaneseq
        %v649 = vshrl.u32 %v648, 7
        %v650 = vsub.s32 0, %v649
        %v651 = vrot.slane %v646, %v650
        %v653 = vpack.i.b16 %v644, %v644
        %v655 = vlaneseq
        %v656 = vshrl.u32 %v655, 7
        %v657 = vsub.s32 0, %v656
        %v658 = vrot.slane %v653, %v657
        %v659 = vadd.bf16 %v589, %v651
        %v660 = vadd.bf16 %v590, %v658
        %v661 = vadd.bf16 %v591, %v651
        %v662 = vadd.bf16 %v592, %v658
        %v663 = vadd.bf16 %v593, %v651
        %v664 = vadd.bf16 %v594, %v658
        %v665 = vadd.bf16 %v595, %v651
        %v666 = vadd.bf16 %v596, %v658
        %v667 = vadd.bf16 %v597, %v651
        %v668 = vadd.bf16 %v598, %v658
        %v669 = vadd.bf16 %v599, %v651
        %v670 = vadd.bf16 %v600, %v658
        %v671 = vadd.bf16 %v601, %v651
        %v672 = vadd.bf16 %v602, %v658
        %v673 = vadd.bf16 %v603, %v651
        %v674 = vadd.bf16 %v604, %v658
        %v675 = vadd.bf16 %v605, %v651
        %v676 = vadd.bf16 %v606, %v658
        %v677 = vadd.bf16 %v607, %v651
        %v678 = vadd.bf16 %v608, %v658
        %v679 = vadd.bf16 %v609, %v651
        %v680 = vadd.bf16 %v610, %v658
        %v681 = vadd.bf16 %v611, %v651
        %v682 = vadd.bf16 %v612, %v658
        %v683 = vadd.bf16 %v613, %v651
        %v684 = vadd.bf16 %v614, %v658
        %v685 = vadd.bf16 %v615, %v651
        %v686 = vadd.bf16 %v616, %v658
        %v687 = vadd.bf16 %v617, %v651
        %v688 = vadd.bf16 %v618, %v658
        %v689 = vadd.bf16 %v619, %v651
        %v690 = vadd.bf16 %v620, %v658
        %v691 = vmax.bf16 %v659, 0
        %v692 = vmax.bf16 %v660, 0
        %v693 = vmax.bf16 %v661, 0
        %v694 = vmax.bf16 %v662, 0
        %v695 = vmax.bf16 %v663, 0
        %v696 = vmax.bf16 %v664, 0
        %v697 = vmax.bf16 %v665, 0
        %v698 = vmax.bf16 %v666, 0
        %v699 = vmax.bf16 %v667, 0
        %v700 = vmax.bf16 %v668, 0
        %v701 = vmax.bf16 %v669, 0
        %v702 = vmax.bf16 %v670, 0
        %v703 = vmax.bf16 %v671, 0
        %v704 = vmax.bf16 %v672, 0
        %v705 = vmax.bf16 %v673, 0
        %v706 = vmax.bf16 %v674, 0
        %v707 = vmax.bf16 %v675, 0
        %v708 = vmax.bf16 %v676, 0
        %v709 = vmax.bf16 %v677, 0
        %v710 = vmax.bf16 %v678, 0
        %v711 = vmax.bf16 %v679, 0
        %v712 = vmax.bf16 %v680, 0
        %v713 = vmax.bf16 %v681, 0
        %v714 = vmax.bf16 %v682, 0
        %v715 = vmax.bf16 %v683, 0
        %v716 = vmax.bf16 %v684, 0
        %v717 = vmax.bf16 %v685, 0
        %v718 = vmax.bf16 %v686, 0
        %v719 = vmax.bf16 %v687, 0
        %v720 = vmax.bf16 %v688, 0
        %v721 = vmax.bf16 %v689, 0
        %v722 = vmax.bf16 %v690, 0
        %v723 = vld [vmem:[%s3] sm:$0xff]
        %v724 = vld [vmem:[%s3 + $0x8] sm:$0xff]
        %v725 = vld [vmem:[%s3 + $0x10] sm:$0xff]
        %v726 = vld [vmem:[%s3 + $0x18] sm:$0xff]
        %v727 = vld [vmem:[%s3 + $0x20] sm:$0xff]
        %v728 = vld [vmem:[%s3 + $0x28] sm:$0xff]
        %v729 = vld [vmem:[%s3 + $0x30] sm:$0xff]
        %v730 = vld [vmem:[%s3 + $0x38] sm:$0xff]
        %v731 = vld [vmem:[%s3 + $0x40] sm:$0xff]
        %v732 = vld [vmem:[%s3 + $0x48] sm:$0xff]
        %v733 = vld [vmem:[%s3 + $0x50] sm:$0xff]
        %v734 = vld [vmem:[%s3 + $0x58] sm:$0xff]
        %v735 = vld [vmem:[%s3 + $0x60] sm:$0xff]
        %v736 = vld [vmem:[%s3 + $0x68] sm:$0xff]
        %v737 = vld [vmem:[%s3 + $0x70] sm:$0xff]
        %v738 = vld [vmem:[%s3 + $0x78] sm:$0xff]
        %v739 = vld [vmem:[%s3 + $0x80] sm:$0xff]
        %v740 = vld [vmem:[%s3 + $0x88] sm:$0xff]
        %v741 = vld [vmem:[%s3 + $0x90] sm:$0xff]
        %v742 = vld [vmem:[%s3 + $0x98] sm:$0xff]
        %v743 = vld [vmem:[%s3 + $0xa0] sm:$0xff]
        %v744 = vld [vmem:[%s3 + $0xa8] sm:$0xff]
        %v745 = vld [vmem:[%s3 + $0xb0] sm:$0xff]
        %v746 = vld [vmem:[%s3 + $0xb8] sm:$0xff]
        %v747 = vld [vmem:[%s3 + $0xc0] sm:$0xff]
        %v748 = vld [vmem:[%s3 + $0xc8] sm:$0xff]
        %v749 = vld [vmem:[%s3 + $0xd0] sm:$0xff]
        %v750 = vld [vmem:[%s3 + $0xd8] sm:$0xff]
        %v751 = vld [vmem:[%s3 + $0xe0] sm:$0xff]
        %v752 = vld [vmem:[%s3 + $0xe8] sm:$0xff]
        %v753 = vld [vmem:[%s3 + $0xf0] sm:$0xff]
        %v754 = vld [vmem:[%s3 + $0xf8] sm:$0xff]
        %v787 = vunpack.c.l.b16 %v723
        %v788 = vunpack.c.h.b16 %v723
        %v789 = vunpack.c.l.b16 %v724
        %v790 = vunpack.c.h.b16 %v724
        %v791 = vunpack.c.l.b16 %v725
        %v792 = vunpack.c.h.b16 %v725
        %v793 = vunpack.c.l.b16 %v726
        %v794 = vunpack.c.h.b16 %v726
        %v795 = vunpack.c.l.b16 %v727
        %v796 = vunpack.c.h.b16 %v727
        %v797 = vunpack.c.l.b16 %v728
        %v798 = vunpack.c.h.b16 %v728
        %v799 = vunpack.c.l.b16 %v729
        %v800 = vunpack.c.h.b16 %v729
        %v801 = vunpack.c.l.b16 %v730
        %v802 = vunpack.c.h.b16 %v730
        %v803 = vunpack.c.l.b16 %v731
        %v804 = vunpack.c.h.b16 %v731
        %v805 = vunpack.c.l.b16 %v732
        %v806 = vunpack.c.h.b16 %v732
        %v807 = vunpack.c.l.b16 %v733
        %v808 = vunpack.c.h.b16 %v733
        %v809 = vunpack.c.l.b16 %v734
        %v810 = vunpack.c.h.b16 %v734
        %v811 = vunpack.c.l.b16 %v735
        %v812 = vunpack.c.h.b16 %v735
        %v813 = vunpack.c.l.b16 %v736
        %v814 = vunpack.c.h.b16 %v736
        %v815 = vunpack.c.l.b16 %v737
        %v816 = vunpack.c.h.b16 %v737
        %v817 = vunpack.c.l.b16 %v738
        %v818 = vunpack.c.h.b16 %v738
        %v819 = vunpack.c.l.b16 %v739
        %v820 = vunpack.c.h.b16 %v739
        %v821 = vunpack.c.l.b16 %v740
        %v822 = vunpack.c.h.b16 %v740
        %v823 = vunpack.c.l.b16 %v741
        %v824 = vunpack.c.h.b16 %v741
        %v825 = vunpack.c.l.b16 %v742
        %v826 = vunpack.c.h.b16 %v742
        %v827 = vunpack.c.l.b16 %v743
        %v828 = vunpack.c.h.b16 %v743
        %v829 = vunpack.c.l.b16 %v744
        %v830 = vunpack.c.h.b16 %v744
        %v831 = vunpack.c.l.b16 %v745
        %v832 = vunpack.c.h.b16 %v745
        %v833 = vunpack.c.l.b16 %v746
        %v834 = vunpack.c.h.b16 %v746
        %v835 = vunpack.c.l.b16 %v747
        %v836 = vunpack.c.h.b16 %v747
        %v837 = vunpack.c.l.b16 %v748
        %v838 = vunpack.c.h.b16 %v748
        %v839 = vunpack.c.l.b16 %v749
        %v840 = vunpack.c.h.b16 %v749
        %v841 = vunpack.c.l.b16 %v750
        %v842 = vunpack.c.h.b16 %v750
        %v843 = vunpack.c.l.b16 %v751
        %v844 = vunpack.c.h.b16 %v751
        %v845 = vunpack.c.l.b16 %v752
        %v846 = vunpack.c.h.b16 %v752
        %v847 = vunpack.c.l.b16 %v753
        %v848 = vunpack.c.h.b16 %v753
        %v849 = vunpack.c.l.b16 %v754
        %v850 = vunpack.c.h.b16 %v754
        %v851 = vpack.c.b16 %v789, %v787
        %v852 = vpack.c.b16 %v790, %v788
        %v853 = vpack.c.b16 %v793, %v791
        %v854 = vpack.c.b16 %v794, %v792
        %v855 = vpack.c.b16 %v797, %v795
        %v856 = vpack.c.b16 %v798, %v796
        %v857 = vpack.c.b16 %v801, %v799
        %v858 = vpack.c.b16 %v802, %v800
        %v859 = vpack.c.b16 %v805, %v803
        %v860 = vpack.c.b16 %v806, %v804
        %v861 = vpack.c.b16 %v809, %v807
        %v862 = vpack.c.b16 %v810, %v808
        %v863 = vpack.c.b16 %v813, %v811
        %v864 = vpack.c.b16 %v814, %v812
        %v865 = vpack.c.b16 %v817, %v815
        %v866 = vpack.c.b16 %v818, %v816
        %v867 = vpack.c.b16 %v821, %v819
        %v868 = vpack.c.b16 %v822, %v820
        %v869 = vpack.c.b16 %v825, %v823
        %v870 = vpack.c.b16 %v826, %v824
        %v871 = vpack.c.b16 %v829, %v827
        %v872 = vpack.c.b16 %v830, %v828
        %v873 = vpack.c.b16 %v833, %v831
        %v874 = vpack.c.b16 %v834, %v832
        %v875 = vpack.c.b16 %v837, %v835
        %v876 = vpack.c.b16 %v838, %v836
        %v877 = vpack.c.b16 %v841, %v839
        %v878 = vpack.c.b16 %v842, %v840
        %v879 = vpack.c.b16 %v845, %v843
        %v880 = vpack.c.b16 %v846, %v844
        %v881 = vpack.c.b16 %v849, %v847
        %v882 = vpack.c.b16 %v850, %v848
        %915 = vmatprep.subr.bf16.mxu0 %v852
        %916 = vmatpush1.bf16.msra.mxu0 %v851
        %917 = vmatprep.subr.bf16.mxu0 %v854
        %918 = vmatpush1.bf16.msra.mxu0 %v853
        %919 = vmatprep.subr.bf16.mxu0 %v856
        %920 = vmatpush1.bf16.msra.mxu0 %v855
        %921 = vmatprep.subr.bf16.mxu0 %v858
        %922 = vmatpush1.bf16.msra.mxu0 %v857
        %923 = vmatprep.subr.bf16.mxu0 %v860
        %924 = vmatpush1.bf16.msra.mxu0 %v859
        %925 = vmatprep.subr.bf16.mxu0 %v862
        %926 = vmatpush1.bf16.msra.mxu0 %v861
        %927 = vmatprep.subr.bf16.mxu0 %v864
        %928 = vmatpush1.bf16.msra.mxu0 %v863
        %929 = vmatprep.subr.bf16.mxu0 %v866
        %930 = vmatpush1.bf16.msra.mxu0 %v865
        %931 = vmatprep.subr.bf16.mxu0 %v868
        %932 = vmatpush1.bf16.msra.mxu0 %v867
        %933 = vmatprep.subr.bf16.mxu0 %v870
        %934 = vmatpush1.bf16.msra.mxu0 %v869
        %935 = vmatprep.subr.bf16.mxu0 %v872
        %936 = vmatpush1.bf16.msra.mxu0 %v871
        %937 = vmatprep.subr.bf16.mxu0 %v874
        %938 = vmatpush1.bf16.msra.mxu0 %v873
        %939 = vmatprep.subr.bf16.mxu0 %v876
        %940 = vmatpush1.bf16.msra.mxu0 %v875
        %941 = vmatprep.subr.bf16.mxu0 %v878
        %942 = vmatpush1.bf16.msra.mxu0 %v877
        %943 = vmatprep.subr.bf16.mxu0 %v880
        %944 = vmatpush1.bf16.msra.mxu0 %v879
        %945 = vmatprep.subr.bf16.mxu0 %v882
        %946 = vmatpush1.bf16.msra.mxu0 %v881
        %947 = vmatprep.mubr.bf16.mxu0 %v692
        %948 = vmatmul.mubr.bf16.gmra.mrb[0].mxu0 %v691
        %v949 = vpop.f32.mrb[0].mxu0
        %v950 = vadd.f32 0.0, %v949
        %v951 = vpop.f32.mrb[0].mxu0
        %v952 = vadd.f32 0.0, %v951
        %v953 = vpop.f32.mrb[0].mxu0
        %v954 = vadd.f32 0.0, %v953
        %v955 = vpop.f32.mrb[0].mxu0
        %v956 = vadd.f32 0.0, %v955
        %957 = vmatprep.mubr.bf16.mxu0 %v694
        %958 = vmatmul.mubr.bf16.gmra.mrb[0].mxu0 %v693
        %v959 = vpop.f32.mrb[0].mxu0
        %v960 = vadd.f32 0.0, %v959
        %v961 = vpop.f32.mrb[0].mxu0
        %v962 = vadd.f32 0.0, %v961
        %v963 = vpop.f32.mrb[0].mxu0
        %v964 = vadd.f32 0.0, %v963
        %v965 = vpop.f32.mrb[0].mxu0
        %v966 = vadd.f32 0.0, %v965
        %967 = vmatprep.mubr.bf16.mxu0 %v696
        %968 = vmatmul.mubr.bf16.gmra.mrb[0].mxu0 %v695
        %v969 = vpop.f32.mrb[0].mxu0
        %v970 = vadd.f32 0.0, %v969
        %v971 = vpop.f32.mrb[0].mxu0
        %v972 = vadd.f32 0.0, %v971
        %v973 = vpop.f32.mrb[0].mxu0
        %v974 = vadd.f32 0.0, %v973
        %v975 = vpop.f32.mrb[0].mxu0
        %v976 = vadd.f32 0.0, %v975
        %977 = vmatprep.mubr.bf16.mxu0 %v698
        %978 = vmatmul.mubr.bf16.gmra.mrb[0].mxu0 %v697
        %v979 = vpop.f32.mrb[0].mxu0
        %v980 = vadd.f32 0.0, %v979
        %v981 = vpop.f32.mrb[0].mxu0
        %v982 = vadd.f32 0.0, %v981
        %v983 = vpop.f32.mrb[0].mxu0
        %v984 = vadd.f32 0.0, %v983
        %v985 = vpop.f32.mrb[0].mxu0
        %v986 = vadd.f32 0.0, %v985
        %987 = vmatprep.mubr.bf16.mxu0 %v700
        %988 = vmatmul.mubr.bf16.gmra.mrb[0].mxu0 %v699
        %v989 = vpop.f32.mrb[0].mxu0
        %v990 = vadd.f32 0.0, %v989
        %v991 = vpop.f32.mrb[0].mxu0
        %v992 = vadd.f32 0.0, %v991
        %v993 = vpop.f32.mrb[0].mxu0
        %v994 = vadd.f32 0.0, %v993
        %v995 = vpop.f32.mrb[0].mxu0
        %v996 = vadd.f32 0.0, %v995
        %997 = vmatprep.mubr.bf16.mxu0 %v702
        %998 = vmatmul.mubr.bf16.gmra.mrb[0].mxu0 %v701
        %v999 = vpop.f32.mrb[0].mxu0
        %v1000 = vadd.f32 0.0, %v999
        %v1001 = vpop.f32.mrb[0].mxu0
        %v1002 = vadd.f32 0.0, %v1001
        %v1003 = vpop.f32.mrb[0].mxu0
        %v1004 = vadd.f32 0.0, %v1003
        %v1005 = vpop.f32.mrb[0].mxu0
        %v1006 = vadd.f32 0.0, %v1005
        %1007 = vmatprep.mubr.bf16.mxu0 %v704
        %1008 = vmatmul.mubr.bf16.gmra.mrb[0].mxu0 %v703
        %v1009 = vpop.f32.mrb[0].mxu0
        %v1010 = vadd.f32 0.0, %v1009
        %v1011 = vpop.f32.mrb[0].mxu0
        %v1012 = vadd.f32 0.0, %v1011
        %v1013 = vpop.f32.mrb[0].mxu0
        %v1014 = vadd.f32 0.0, %v1013
        %v1015 = vpop.f32.mrb[0].mxu0
        %v1016 = vadd.f32 0.0, %v1015
        %1017 = vmatprep.mubr.bf16.mxu0 %v706
        %1018 = vmatmul.mubr.bf16.gmra.mrb[0].mxu0 %v705
        %v1019 = vpop.f32.mrb[0].mxu0
        %v1020 = vadd.f32 0.0, %v1019
        %v1021 = vpop.f32.mrb[0].mxu0
        %v1022 = vadd.f32 0.0, %v1021
        %v1023 = vpop.f32.mrb[0].mxu0
        %v1024 = vadd.f32 0.0, %v1023
        %v1025 = vpop.f32.mrb[0].mxu0
        %v1026 = vadd.f32 0.0, %v1025
        %1027 = vmatprep.mubr.bf16.mxu0 %v708
        %1028 = vmatmul.mubr.bf16.gmra.mrb[0].mxu0 %v707
        %v1029 = vpop.f32.mrb[0].mxu0
        %v1030 = vadd.f32 0.0, %v1029
        %v1031 = vpop.f32.mrb[0].mxu0
        %v1032 = vadd.f32 0.0, %v1031
        %v1033 = vpop.f32.mrb[0].mxu0
        %v1034 = vadd.f32 0.0, %v1033
        %v1035 = vpop.f32.mrb[0].mxu0
        %v1036 = vadd.f32 0.0, %v1035
        %1037 = vmatprep.mubr.bf16.mxu0 %v710
        %1038 = vmatmul.mubr.bf16.gmra.mrb[0].mxu0 %v709
        %v1039 = vpop.f32.mrb[0].mxu0
        %v1040 = vadd.f32 0.0, %v1039
        %v1041 = vpop.f32.mrb[0].mxu0
        %v1042 = vadd.f32 0.0, %v1041
        %v1043 = vpop.f32.mrb[0].mxu0
        %v1044 = vadd.f32 0.0, %v1043
        %v1045 = vpop.f32.mrb[0].mxu0
        %v1046 = vadd.f32 0.0, %v1045
        %1047 = vmatprep.mubr.bf16.mxu0 %v712
        %1048 = vmatmul.mubr.bf16.gmra.mrb[0].mxu0 %v711
        %v1049 = vpop.f32.mrb[0].mxu0
        %v1050 = vadd.f32 0.0, %v1049
        %v1051 = vpop.f32.mrb[0].mxu0
        %v1052 = vadd.f32 0.0, %v1051
        %v1053 = vpop.f32.mrb[0].mxu0
        %v1054 = vadd.f32 0.0, %v1053
        %v1055 = vpop.f32.mrb[0].mxu0
        %v1056 = vadd.f32 0.0, %v1055
        %1057 = vmatprep.mubr.bf16.mxu0 %v714
        %1058 = vmatmul.mubr.bf16.gmra.mrb[0].mxu0 %v713
        %v1059 = vpop.f32.mrb[0].mxu0
        %v1060 = vadd.f32 0.0, %v1059
        %v1061 = vpop.f32.mrb[0].mxu0
        %v1062 = vadd.f32 0.0, %v1061
        %v1063 = vpop.f32.mrb[0].mxu0
        %v1064 = vadd.f32 0.0, %v1063
        %v1065 = vpop.f32.mrb[0].mxu0
        %v1066 = vadd.f32 0.0, %v1065
        %1067 = vmatprep.mubr.bf16.mxu0 %v716
        %1068 = vmatmul.mubr.bf16.gmra.mrb[0].mxu0 %v715
        %v1069 = vpop.f32.mrb[0].mxu0
        %v1070 = vadd.f32 0.0, %v1069
        %v1071 = vpop.f32.mrb[0].mxu0
        %v1072 = vadd.f32 0.0, %v1071
        %v1073 = vpop.f32.mrb[0].mxu0
        %v1074 = vadd.f32 0.0, %v1073
        %v1075 = vpop.f32.mrb[0].mxu0
        %v1076 = vadd.f32 0.0, %v1075
        %1077 = vmatprep.mubr.bf16.mxu0 %v718
        %1078 = vmatmul.mubr.bf16.gmra.mrb[0].mxu0 %v717
        %v1079 = vpop.f32.mrb[0].mxu0
        %v1080 = vadd.f32 0.0, %v1079
        %v1081 = vpop.f32.mrb[0].mxu0
        %v1082 = vadd.f32 0.0, %v1081
        %v1083 = vpop.f32.mrb[0].mxu0
        %v1084 = vadd.f32 0.0, %v1083
        %v1085 = vpop.f32.mrb[0].mxu0
        %v1086 = vadd.f32 0.0, %v1085
        %1087 = vmatprep.mubr.bf16.mxu0 %v720
        %1088 = vmatmul.mubr.bf16.gmra.mrb[0].mxu0 %v719
        %v1089 = vpop.f32.mrb[0].mxu0
        %v1090 = vadd.f32 0.0, %v1089
        %v1091 = vpop.f32.mrb[0].mxu0
        %v1092 = vadd.f32 0.0, %v1091
        %v1093 = vpop.f32.mrb[0].mxu0
        %v1094 = vadd.f32 0.0, %v1093
        %v1095 = vpop.f32.mrb[0].mxu0
        %v1096 = vadd.f32 0.0, %v1095
        %1097 = vmatprep.mubr.bf16.mxu0 %v722
        %1098 = vmatmul.mubr.bf16.gmra.mrb[0].mxu0 %v721
        %v1099 = vpop.f32.mrb[0].mxu0
        %v1100 = vadd.f32 0.0, %v1099
        %v1101 = vpop.f32.mrb[0].mxu0
        %v1102 = vadd.f32 0.0, %v1101
        %v1103 = vpop.f32.mrb[0].mxu0
        %v1104 = vadd.f32 0.0, %v1103
        %v1105 = vpop.f32.mrb[0].mxu0
        %v1106 = vadd.f32 0.0, %v1105
        %1107 = vdwg.mxu0
        %v1108 = vpack.c.bf16 %v954, %v950
        %v1109 = vpack.c.bf16 %v956, %v952
        %v1110 = vpack.c.bf16 %v964, %v960
        %v1111 = vpack.c.bf16 %v966, %v962
        %v1112 = vpack.c.bf16 %v974, %v970
        %v1113 = vpack.c.bf16 %v976, %v972
        %v1114 = vpack.c.bf16 %v984, %v980
        %v1115 = vpack.c.bf16 %v986, %v982
        %v1116 = vpack.c.bf16 %v994, %v990
        %v1117 = vpack.c.bf16 %v996, %v992
        %v1118 = vpack.c.bf16 %v1004, %v1000
        %v1119 = vpack.c.bf16 %v1006, %v1002
        %v1120 = vpack.c.bf16 %v1014, %v1010
        %v1121 = vpack.c.bf16 %v1016, %v1012
        %v1122 = vpack.c.bf16 %v1024, %v1020
        %v1123 = vpack.c.bf16 %v1026, %v1022
        %v1124 = vpack.c.bf16 %v1034, %v1030
        %v1125 = vpack.c.bf16 %v1036, %v1032
        %v1126 = vpack.c.bf16 %v1044, %v1040
        %v1127 = vpack.c.bf16 %v1046, %v1042
        %v1128 = vpack.c.bf16 %v1054, %v1050
        %v1129 = vpack.c.bf16 %v1056, %v1052
        %v1130 = vpack.c.bf16 %v1064, %v1060
        %v1131 = vpack.c.bf16 %v1066, %v1062
        %v1132 = vpack.c.bf16 %v1074, %v1070
        %v1133 = vpack.c.bf16 %v1076, %v1072
        %v1134 = vpack.c.bf16 %v1084, %v1080
        %v1135 = vpack.c.bf16 %v1086, %v1082
        %v1136 = vpack.c.bf16 %v1094, %v1090
        %v1137 = vpack.c.bf16 %v1096, %v1092
        %v1138 = vpack.c.bf16 %v1104, %v1100
        %v1139 = vpack.c.bf16 %v1106, %v1102
        %v1140 = vld [vmem:[%s4] sm:$0x3]
        %v1143 = vunpack.c.l.s4 1966171168
        %v1144 = vunpack.c.0.s8 %v1143
        %v1145 = vlaneseq
        %v1146 = vshrl.u32 %v1145, 7
        %v1147 = vsub.s32 %v1144, %v1146
        %v1148 = vrot.slane %v1140, %v1147
        %v1149 = vcombine.high %v1148, %v1148
        %v1151 = vunpack.c.l.s4 1966171168
        %v1152 = vunpack.c.0.s8 %v1151
        %v1153 = vlaneseq
        %v1154 = vshrl.u32 %v1153, 7
        %v1155 = vsub.s32 %v1152, %v1154
        %v1156 = vrot.slane %v1148, %v1155
        %v1158 = vunpack.c.l.s4 1966171168
        %v1159 = vunpack.c.0.s8 %v1158
        %v1160 = vlaneseq
        %v1161 = vshrl.u32 %v1160, 7
        %v1162 = vsub.s32 %v1159, %v1161
        %v1163 = vrot.slane %v1149, %v1162
        %v1165 = vpack.i.b16 %v1156, %v1156
        %v1167 = vlaneseq
        %v1168 = vshrl.u32 %v1167, 7
        %v1169 = vsub.s32 0, %v1168
        %v1170 = vrot.slane %v1165, %v1169
        %v1172 = vpack.i.b16 %v1163, %v1163
        %v1174 = vlaneseq
        %v1175 = vshrl.u32 %v1174, 7
        %v1176 = vsub.s32 0, %v1175
        %v1177 = vrot.slane %v1172, %v1176
        %v1178 = vadd.bf16 %v1108, %v1170
        %v1179 = vadd.bf16 %v1109, %v1177
        %v1180 = vadd.bf16 %v1110, %v1170
        %v1181 = vadd.bf16 %v1111, %v1177
        %v1182 = vadd.bf16 %v1112, %v1170
        %v1183 = vadd.bf16 %v1113, %v1177
        %v1184 = vadd.bf16 %v1114, %v1170
        %v1185 = vadd.bf16 %v1115, %v1177
        %v1186 = vadd.bf16 %v1116, %v1170
        %v1187 = vadd.bf16 %v1117, %v1177
        %v1188 = vadd.bf16 %v1118, %v1170
        %v1189 = vadd.bf16 %v1119, %v1177
        %v1190 = vadd.bf16 %v1120, %v1170
        %v1191 = vadd.bf16 %v1121, %v1177
        %v1192 = vadd.bf16 %v1122, %v1170
        %v1193 = vadd.bf16 %v1123, %v1177
        %v1194 = vadd.bf16 %v1124, %v1170
        %v1195 = vadd.bf16 %v1125, %v1177
        %v1196 = vadd.bf16 %v1126, %v1170
        %v1197 = vadd.bf16 %v1127, %v1177
        %v1198 = vadd.bf16 %v1128, %v1170
        %v1199 = vadd.bf16 %v1129, %v1177
        %v1200 = vadd.bf16 %v1130, %v1170
        %v1201 = vadd.bf16 %v1131, %v1177
        %v1202 = vadd.bf16 %v1132, %v1170
        %v1203 = vadd.bf16 %v1133, %v1177
        %v1204 = vadd.bf16 %v1134, %v1170
        %v1205 = vadd.bf16 %v1135, %v1177
        %v1206 = vadd.bf16 %v1136, %v1170
        %v1207 = vadd.bf16 %v1137, %v1177
        %v1208 = vadd.bf16 %v1138, %v1170
        %v1209 = vadd.bf16 %v1139, %v1177
        %v1210 = vmax.bf16 %v1178, 0
        %v1211 = vmax.bf16 %v1179, 0
        %v1212 = vmax.bf16 %v1180, 0
        %v1213 = vmax.bf16 %v1181, 0
        %v1214 = vmax.bf16 %v1182, 0
        %v1215 = vmax.bf16 %v1183, 0
        %v1216 = vmax.bf16 %v1184, 0
        %v1217 = vmax.bf16 %v1185, 0
        %v1218 = vmax.bf16 %v1186, 0
        %v1219 = vmax.bf16 %v1187, 0
        %v1220 = vmax.bf16 %v1188, 0
        %v1221 = vmax.bf16 %v1189, 0
        %v1222 = vmax.bf16 %v1190, 0
        %v1223 = vmax.bf16 %v1191, 0
        %v1224 = vmax.bf16 %v1192, 0
        %v1225 = vmax.bf16 %v1193, 0
        %v1226 = vmax.bf16 %v1194, 0
        %v1227 = vmax.bf16 %v1195, 0
        %v1228 = vmax.bf16 %v1196, 0
        %v1229 = vmax.bf16 %v1197, 0
        %v1230 = vmax.bf16 %v1198, 0
        %v1231 = vmax.bf16 %v1199, 0
        %v1232 = vmax.bf16 %v1200, 0
        %v1233 = vmax.bf16 %v1201, 0
        %v1234 = vmax.bf16 %v1202, 0
        %v1235 = vmax.bf16 %v1203, 0
        %v1236 = vmax.bf16 %v1204, 0
        %v1237 = vmax.bf16 %v1205, 0
        %v1238 = vmax.bf16 %v1206, 0
        %v1239 = vmax.bf16 %v1207, 0
        %v1240 = vmax.bf16 %v1208, 0
        %v1241 = vmax.bf16 %v1209, 0
        %v1242 = vld [vmem:[%s5] sm:$0xff]
        %v1243 = vld [vmem:[%s5 + $0x8] sm:$0xff]
        %v1244 = vld [vmem:[%s5 + $0x10] sm:$0xff]
        %v1245 = vld [vmem:[%s5 + $0x18] sm:$0xff]
        %v1246 = vld [vmem:[%s5 + $0x20] sm:$0xff]
        %v1247 = vld [vmem:[%s5 + $0x28] sm:$0xff]
        %v1248 = vld [vmem:[%s5 + $0x30] sm:$0xff]
        %v1249 = vld [vmem:[%s5 + $0x38] sm:$0xff]
        %v1250 = vld [vmem:[%s5 + $0x40] sm:$0xff]
        %v1251 = vld [vmem:[%s5 + $0x48] sm:$0xff]
        %v1252 = vld [vmem:[%s5 + $0x50] sm:$0xff]
        %v1253 = vld [vmem:[%s5 + $0x58] sm:$0xff]
        %v1254 = vld [vmem:[%s5 + $0x60] sm:$0xff]
        %v1255 = vld [vmem:[%s5 + $0x68] sm:$0xff]
        %v1256 = vld [vmem:[%s5 + $0x70] sm:$0xff]
        %v1257 = vld [vmem:[%s5 + $0x78] sm:$0xff]
        %v1258 = vld [vmem:[%s6] sm:$0xff]
        %v1259 = vld [vmem:[%s6 + $0x8] sm:$0xff]
        %v1260 = vld [vmem:[%s6 + $0x10] sm:$0xff]
        %v1261 = vld [vmem:[%s6 + $0x18] sm:$0xff]
        %v1262 = vld [vmem:[%s6 + $0x20] sm:$0xff]
        %v1263 = vld [vmem:[%s6 + $0x28] sm:$0xff]
        %v1264 = vld [vmem:[%s6 + $0x30] sm:$0xff]
        %v1265 = vld [vmem:[%s6 + $0x38] sm:$0xff]
        %v1266 = vld [vmem:[%s6 + $0x40] sm:$0xff]
        %v1267 = vld [vmem:[%s6 + $0x48] sm:$0xff]
        %v1268 = vld [vmem:[%s6 + $0x50] sm:$0xff]
        %v1269 = vld [vmem:[%s6 + $0x58] sm:$0xff]
        %v1270 = vld [vmem:[%s6 + $0x60] sm:$0xff]
        %v1271 = vld [vmem:[%s6 + $0x68] sm:$0xff]
        %v1272 = vld [vmem:[%s6 + $0x70] sm:$0xff]
        %v1273 = vld [vmem:[%s6 + $0x78] sm:$0xff]
        %1275 = vset.pattern.permute.xlu0 0
        %1276 = vperm.xlu0 %1275, %v1258
        %v1277 = vpop.permute.xlu0 %1276
        %1280 = vset.pattern.permute.xlu0 0
        %1281 = vperm.xlu0 %1280, %v1259
        %v1282 = vpop.permute.xlu0 %1281
        %1284 = vset.pattern.permute.xlu0 0
        %1285 = vperm.xlu0 %1284, %v1260
        %v1286 = vpop.permute.xlu0 %1285
        %1288 = vset.pattern.permute.xlu0 0
        %1289 = vperm.xlu0 %1288, %v1261
        %v1290 = vpop.permute.xlu0 %1289
        %1292 = vset.pattern.permute.xlu0 0
        %1293 = vperm.xlu0 %1292, %v1262
        %v1294 = vpop.permute.xlu0 %1293
        %1296 = vset.pattern.permute.xlu0 0
        %1297 = vperm.xlu0 %1296, %v1263
        %v1298 = vpop.permute.xlu0 %1297
        %1300 = vset.pattern.permute.xlu0 0
        %1301 = vperm.xlu0 %1300, %v1264
        %v1302 = vpop.permute.xlu0 %1301
        %1304 = vset.pattern.permute.xlu0 0
        %1305 = vperm.xlu0 %1304, %v1265
        %v1306 = vpop.permute.xlu0 %1305
        %1308 = vset.pattern.permute.xlu0 0
        %1309 = vperm.xlu0 %1308, %v1266
        %v1310 = vpop.permute.xlu0 %1309
        %1312 = vset.pattern.permute.xlu0 0
        %1313 = vperm.xlu0 %1312, %v1267
        %v1314 = vpop.permute.xlu0 %1313
        %1316 = vset.pattern.permute.xlu0 0
        %1317 = vperm.xlu0 %1316, %v1268
        %v1318 = vpop.permute.xlu0 %1317
        %1320 = vset.pattern.permute.xlu0 0
        %1321 = vperm.xlu0 %1320, %v1269
        %v1322 = vpop.permute.xlu0 %1321
        %1324 = vset.pattern.permute.xlu0 0
        %1325 = vperm.xlu0 %1324, %v1270
        %v1326 = vpop.permute.xlu0 %1325
        %1328 = vset.pattern.permute.xlu0 0
        %1329 = vperm.xlu0 %1328, %v1271
        %v1330 = vpop.permute.xlu0 %1329
        %1332 = vset.pattern.permute.xlu0 0
        %1333 = vperm.xlu0 %1332, %v1272
        %v1334 = vpop.permute.xlu0 %1333
        %1336 = vset.pattern.permute.xlu0 0
        %1337 = vperm.xlu0 %1336, %v1273
        %v1338 = vpop.permute.xlu0 %1337
        %v1355 = vunpack.c.l.b16 %v1242
        %v1356 = vunpack.c.h.b16 %v1242
        %v1357 = vunpack.c.l.b16 %v1243
        %v1358 = vunpack.c.h.b16 %v1243
        %v1359 = vunpack.c.l.b16 %v1244
        %v1360 = vunpack.c.h.b16 %v1244
        %v1361 = vunpack.c.l.b16 %v1245
        %v1362 = vunpack.c.h.b16 %v1245
        %v1363 = vunpack.c.l.b16 %v1246
        %v1364 = vunpack.c.h.b16 %v1246
        %v1365 = vunpack.c.l.b16 %v1247
        %v1366 = vunpack.c.h.b16 %v1247
        %v1367 = vunpack.c.l.b16 %v1248
        %v1368 = vunpack.c.h.b16 %v1248
        %v1369 = vunpack.c.l.b16 %v1249
        %v1370 = vunpack.c.h.b16 %v1249
        %v1371 = vunpack.c.l.b16 %v1250
        %v1372 = vunpack.c.h.b16 %v1250
        %v1373 = vunpack.c.l.b16 %v1251
        %v1374 = vunpack.c.h.b16 %v1251
        %v1375 = vunpack.c.l.b16 %v1252
        %v1376 = vunpack.c.h.b16 %v1252
        %v1377 = vunpack.c.l.b16 %v1253
        %v1378 = vunpack.c.h.b16 %v1253
        %v1379 = vunpack.c.l.b16 %v1254
        %v1380 = vunpack.c.h.b16 %v1254
        %v1381 = vunpack.c.l.b16 %v1255
        %v1382 = vunpack.c.h.b16 %v1255
        %v1383 = vunpack.c.l.b16 %v1256
        %v1384 = vunpack.c.h.b16 %v1256
        %v1385 = vunpack.c.l.b16 %v1257
        %v1386 = vunpack.c.h.b16 %v1257
        %v1387 = vpack.c.b16 %v1357, %v1355
        %v1388 = vpack.c.b16 %v1358, %v1356
        %v1389 = vpack.c.b16 %v1361, %v1359
        %v1390 = vpack.c.b16 %v1362, %v1360
        %v1391 = vpack.c.b16 %v1365, %v1363
        %v1392 = vpack.c.b16 %v1366, %v1364
        %v1393 = vpack.c.b16 %v1369, %v1367
        %v1394 = vpack.c.b16 %v1370, %v1368
        %v1395 = vpack.c.b16 %v1373, %v1371
        %v1396 = vpack.c.b16 %v1374, %v1372
        %v1397 = vpack.c.b16 %v1377, %v1375
        %v1398 = vpack.c.b16 %v1378, %v1376
        %v1399 = vpack.c.b16 %v1381, %v1379
        %v1400 = vpack.c.b16 %v1382, %v1380
        %v1401 = vpack.c.b16 %v1385, %v1383
        %v1402 = vpack.c.b16 %v1386, %v1384
        %1419 = vmatprep.subr.bf16.mxu0 %v1211
        %1420 = vmatpush1.bf16.xpose.msra.mxu0 %v1210
        %1421 = vmatprep.subr.bf16.mxu0 %v1213
        %1422 = vmatpush1.bf16.xpose.msra.mxu0 %v1212
        %1423 = vmatprep.subr.bf16.mxu0 %v1215
        %1424 = vmatpush1.bf16.xpose.msra.mxu0 %v1214
        %1425 = vmatprep.subr.bf16.mxu0 %v1217
        %1426 = vmatpush1.bf16.xpose.msra.mxu0 %v1216
        %1427 = vmatprep.subr.bf16.mxu0 %v1219
        %1428 = vmatpush1.bf16.xpose.msra.mxu0 %v1218
        %1429 = vmatprep.subr.bf16.mxu0 %v1221
        %1430 = vmatpush1.bf16.xpose.msra.mxu0 %v1220
        %1431 = vmatprep.subr.bf16.mxu0 %v1223
        %1432 = vmatpush1.bf16.xpose.msra.mxu0 %v1222
        %1433 = vmatprep.subr.bf16.mxu0 %v1225
        %1434 = vmatpush1.bf16.xpose.msra.mxu0 %v1224
        %1435 = vmatprep.subr.bf16.mxu0 %v1227
        %1436 = vmatpush1.bf16.xpose.msra.mxu0 %v1226
        %1437 = vmatprep.subr.bf16.mxu0 %v1229
        %1438 = vmatpush1.bf16.xpose.msra.mxu0 %v1228
        %1439 = vmatprep.subr.bf16.mxu0 %v1231
        %1440 = vmatpush1.bf16.xpose.msra.mxu0 %v1230
        %1441 = vmatprep.subr.bf16.mxu0 %v1233
        %1442 = vmatpush1.bf16.xpose.msra.mxu0 %v1232
        %1443 = vmatprep.subr.bf16.mxu0 %v1235
        %1444 = vmatpush1.bf16.xpose.msra.mxu0 %v1234
        %1445 = vmatprep.subr.bf16.mxu0 %v1237
        %1446 = vmatpush1.bf16.xpose.msra.mxu0 %v1236
        %1447 = vmatprep.subr.bf16.mxu0 %v1239
        %1448 = vmatpush1.bf16.xpose.msra.mxu0 %v1238
        %1449 = vmatprep.subr.bf16.mxu0 %v1241
        %1450 = vmatpush1.bf16.xpose.msra.mxu0 %v1240
        %1451 = vmatprep.mubr.bf16.mxu0 %v1388
        %1452 = vmatmul.mubr.bf16.gmra.mrb[0].mxu0 %v1387
        %v1453 = vpop.f32.mrb[0].mxu0
        %v1454 = vadd.f32 %v1277, %v1453
        %v1455 = vpop.f32.mrb[0].mxu0
        %v1456 = vadd.f32 %v1277, %v1455
        %v1457 = vpop.f32.mrb[0].mxu0
        %v1458 = vpop.f32.mrb[0].mxu0
        %1459 = vmatprep.mubr.bf16.mxu0 %v1390
        %1460 = vmatmul.mubr.bf16.gmra.mrb[0].mxu0 %v1389
        %v1461 = vpop.f32.mrb[0].mxu0
        %v1462 = vpop.f32.mrb[0].mxu0
        %v1463 = vpop.f32.mrb[0].mxu0
        %v1464 = vpop.f32.mrb[0].mxu0
        %1465 = vmatprep.mubr.bf16.mxu0 %v1392
        %1466 = vmatmul.mubr.bf16.gmra.mrb[0].mxu0 %v1391
        %v1467 = vpop.f32.mrb[0].mxu0
        %v1468 = vpop.f32.mrb[0].mxu0
        %v1469 = vpop.f32.mrb[0].mxu0
        %v1470 = vpop.f32.mrb[0].mxu0
        %1471 = vmatprep.mubr.bf16.mxu0 %v1394
        %1472 = vmatmul.mubr.bf16.gmra.mrb[0].mxu0 %v1393
        %v1473 = vpop.f32.mrb[0].mxu0
        %v1474 = vpop.f32.mrb[0].mxu0
        %v1475 = vpop.f32.mrb[0].mxu0
        %v1476 = vpop.f32.mrb[0].mxu0
        %1477 = vmatprep.mubr.bf16.mxu0 %v1396
        %1478 = vmatmul.mubr.bf16.gmra.mrb[0].mxu0 %v1395
        %v1479 = vpop.f32.mrb[0].mxu0
        %v1480 = vpop.f32.mrb[0].mxu0
        %v1481 = vpop.f32.mrb[0].mxu0
        %v1482 = vpop.f32.mrb[0].mxu0
        %1483 = vmatprep.mubr.bf16.mxu0 %v1398
        %1484 = vmatmul.mubr.bf16.gmra.mrb[0].mxu0 %v1397
        %v1485 = vpop.f32.mrb[0].mxu0
        %v1486 = vpop.f32.mrb[0].mxu0
        %v1487 = vpop.f32.mrb[0].mxu0
        %v1488 = vpop.f32.mrb[0].mxu0
        %1489 = vmatprep.mubr.bf16.mxu0 %v1400
        %1490 = vmatmul.mubr.bf16.gmra.mrb[0].mxu0 %v1399
        %v1491 = vpop.f32.mrb[0].mxu0
        %v1492 = vpop.f32.mrb[0].mxu0
        %v1493 = vpop.f32.mrb[0].mxu0
        %v1494 = vpop.f32.mrb[0].mxu0
        %1495 = vmatprep.mubr.bf16.mxu0 %v1402
        %1496 = vmatmul.mubr.bf16.gmra.mrb[0].mxu0 %v1401
        %v1497 = vpop.f32.mrb[0].mxu0
        %v1498 = vpop.f32.mrb[0].mxu0
        %v1499 = vpop.f32.mrb[0].mxu0
        %v1500 = vpop.f32.mrb[0].mxu0
        %1501 = vdwg.mxu0
        %v1504 = vcombine.low %v1454, %v1456
        %1506 = vst [vmem:[%s272] sm:$0x77] %v1504
        %s1507 = sand.u32 %s181, 1
        %s1508 = scalar_lea.sflag [#allocation3], %s1507
        %s1509 = sand.u32 %s181, 1
        %s1510 = smul.addr %s1509, 8
        %s1511 = scalar_lea.vmem [#allocation2], %s1510
        // Predicated region
        $region49: #{tpu_custom_call.1} parent=47 // pred_check
          %p1512 = pneg %p191
        $region50: #{tpu_custom_call.1} parent=47 // pred_check_branch
          %1514 = sbr.rel (%p1512) target = $region52
        $region51: #{tpu_custom_call.1} parent=47 // pred_region
          %s1515 = smul.u32 2, %s21
          %s1517 = ssub.s32 128, 128
          %1518 = vsyncadd %s1508, %s1517
          %s1519 = smul.addr %s1515, 64
          %s1520 = scalar_lea.hbm %s7, %s1519
          %s1522 = sshll.u32 %s1511, 4
          %s1523 = int_to_ptr.vmem [resolvable:$true] %s1522
          %1525 = dma.vmem_to_hbm [thread:$0]  %s1523, 128, %s1520, %s1508
        $region52: #{tpu_custom_call.1} parent=47 // pred_fallthru
          _
      $region48: #{tpu_custom_call.1} parent=5 // pred_fallthru
        _
      %p1526 = scmp.le.s32.totalorder 2, %s16
      // Predicated region
      $region53: #{tpu_custom_call.1} parent=5 // pred_check
        %p1527 = pneg %p1526
      $region54: #{tpu_custom_call.1} parent=5 // pred_check_branch
        %1529 = sbr.rel (%p1527) target = $region56
      $region55: #{tpu_custom_call.1} parent=5 // pred_region
        %s1530 = ssub.s32 %s16, 2
        // Predicated region
        $region57: #{tpu_custom_call.1} parent=55 // pred_check
          %p1531 = pneg %p197
        $region58: #{tpu_custom_call.1} parent=55 // pred_check_branch
          %1533 = sbr.rel (%p1531) target = $region60
        $region59: #{tpu_custom_call.1} parent=55 // pred_region
          %s1534 = sand.u32 %s182, 1
          %s1535 = scalar_lea.sflag [#allocation3], %s1534
          %s1536 = sand.u32 %s182, 1
          %s1537 = smul.addr %s1536, 8
          %s1538 = scalar_lea.vmem [#allocation2], %s1537
          %1539 = dma.done %s1535, 128
        $region60: #{tpu_custom_call.1} parent=55 // pred_fallthru
          _
      $region56: #{tpu_custom_call.1} parent=5 // pred_fallthru
        _
    $region6: #{tpu_custom_call.1} parent=1 // loop_footer
      %s20 = sadd.s32 1, %s16
    $region7: #{tpu_custom_call.1} parent=1 // loop_footer_branch
      %15 = sbr.rel target = $region3
    $region8: #{tpu_custom_call.1} parent=1 // loop_exit
      _
    %1540 = vsyncpa [#allocation3], 1
    %s1541 = scalar_lea.sflag [#allocation3], 1
    %1542 = vsyncpa %s1541, 1

</llo_original>
